<compile_context>
chip_gen: v6e
topology: v6e:2x2x1
jax: 0.10.0
libtpu: 0.0.40
codegen_flags: <defaults>
</compile_context>

<pallas_src>
import functools

import jax
import jax.numpy as jnp
from jax.experimental import pallas as pl
from jax.experimental.pallas import tpu as pltpu


# ----------------------------------------------------------------------------
# Pallas kernel
# ----------------------------------------------------------------------------
def _window_attn_kernel(
    x_ref,       # (BN, C)    bf16  streamed input rows
    wqkv_ref,    # (C, 3C)    bf16  fused QKV weight (scale folded into Q cols)
    bqkv_ref,    # (1, 3C)    f32   fused QKV bias   (scale folded into Q bias)
    wp_ref,      # (C, C)     bf16  output projection weight
    bp_ref,      # (1, C)     f32   output projection bias
    bias_ref,    # (H, N, N)  f32   relative position bias (pre-gathered)
    out_ref,     # (BN, C)    bf16  streamed output rows
    qkv_ref,     # (BN, 3C)   bf16  VMEM scratch — bounds the QKV live range
    *,
    num_heads: int,
    head_dim: int,
    win_batch: int,
    seq_len: int,
):
    C = num_heads * head_dim
    BN = win_batch * seq_len

    # Fused QKV projection on the MXU (bf16 operands, f32 accumulation), bias
    # add in f32, then immediately dropped into a bf16 VMEM scratch so the f32
    # (BN, 3C) intermediate's live range ends here instead of spanning the
    # statically-unrolled head loop (matters most under v7x's 64 MiB VMEM).
    qkv = jnp.dot(x_ref[...], wqkv_ref[...], preferred_element_type=jnp.float32)
    qkv_ref[...] = (qkv + bqkv_ref[...]).astype(jnp.bfloat16)

    # Per-head attention, each head folded directly into the output projection:
    #   y += (softmax(q_h k_h^T + bias_h) @ v_h) @ wp[h*Dh:(h+1)*Dh, :]
    # No (BN, C) o_scratch roundtrip, no narrow-lane (<128) per-head stores;
    # reads below are static ref slices, so the live set is one head's tiles.
    y = jnp.zeros((BN, C), jnp.float32)
    for h in range(num_heads):  # static unroll (Swin head counts are small)
        lo = h * head_dim
        qh = qkv_ref[:, lo:lo + head_dim].reshape(win_batch, seq_len, head_dim)
        kh = qkv_ref[:, C + lo:C + lo + head_dim].reshape(win_batch, seq_len, head_dim)
        vh = qkv_ref[:, 2 * C + lo:2 * C + lo + head_dim].reshape(win_batch, seq_len, head_dim)

        # Window-batched logits; last-dim contraction — no K transpose (XLU).
        logits = jnp.einsum(
            "bnd,bmd->bnm", qh, kh, preferred_element_type=jnp.float32
        )                                                   # (Bblk, N, N)
        logits = logits + bias_ref[h][None]

        # f32 softmax (keep f32 on v5e: no bf16 VALU/EUP), deferred normalization.
        m = jnp.max(logits, axis=-1, keepdims=True)
        p = jnp.exp(logits - m)
        denom = jnp.sum(p, axis=-1, keepdims=True)          # (Bblk, N, 1)

        o_h = jnp.einsum(
            "bnm,bmd->bnd", p.astype(jnp.bfloat16), vh,
            preferred_element_type=jnp.float32,
        )                                                   # (Bblk, N, Dh)
        o_h = o_h * pl.reciprocal(denom, approx=False)

        # Fold this head straight into the output projection (accumulate in f32).
        y = y + jnp.dot(
            o_h.reshape(BN, head_dim).astype(jnp.bfloat16),
            wp_ref[lo:lo + head_dim, :],
            preferred_element_type=jnp.float32,
        )

    out_ref[...] = (y + bp_ref[...]).astype(out_ref.dtype)


# ----------------------------------------------------------------------------
# Wrapper
# ----------------------------------------------------------------------------
def _vmem_bytes_estimate(bn, c, h, n):
    """Rough per-step VMEM footprint (double-buffered I/O + weights + scratch)."""
    bf, f32 = 2, 4
    io = 2 * bn * c * bf * 2                                   # x in + out (bf16), 2 buffers
    wts = 2 * (c * 3 * c * bf + 3 * c * f32 + c * c * bf + c * f32 + h * n * n * f32)
    scratch = bn * 3 * c * bf                                  # bf16 qkv scratch
    inter = bn * 3 * c * f32 + 2 * (bn // n) * n * n * f32 + bn * c * f32
    return io + wts + scratch + inter


def window_attention(x, params, rel_pos_bias, *, num_heads, win_batch=None):
    """x: (B_, N, C) f32.  rel_pos_bias: (num_heads, N, N) f32."""
    B_, N, C = x.shape
    head_dim = C // num_heads
    scale = head_dim ** (-0.5)

    wq, bq, wk, bk, wv, bv, wp, bp = params

    # Parameter packing (hoisted to param-pack time in a real pipeline): fold
    # the qk scale into the Q projection, fuse Q|K|V into one (C, 3C) weight,
    # store matmul weights in bf16 (biases stay f32).
    wqkv = jnp.concatenate([wq * scale, wk, wv], axis=1).astype(jnp.bfloat16)  # (C, 3C)
    bqkv = jnp.concatenate([bq * scale, bk, bv], axis=1)                        # (1, 3C) f32
    wp_b = wp.astype(jnp.bfloat16)

    # Window batching: aim for ~2048 projection rows per grid step (per-step
    # pipeline overhead ~0.35us makes small tiles overhead-dominated), but keep
    # n_blocks >= 4 so both v7x TensorCores get >= 2 pipelined steps each, and
    # stay inside a conservative VMEM budget (v7x physical VMEM is 64 MiB).
    vmem_budget = 40 * 1024 * 1024
    if win_batch is None:
        wb = max(1, min(2048 // max(N, 1), max(1, B_ // 4)))
        while wb > 1 and _vmem_bytes_estimate(wb * N, C, num_heads, N) > vmem_budget:
            wb -= 1
        while B_ % wb:
            wb -= 1
        win_batch = wb
    assert B_ % win_batch == 0
    n_blocks = B_ // win_batch
    BN = win_batch * N

    # Stream x (and the output) in bf16: halves HBM traffic on the big tensors.
    # (In a full pipeline the upstream producer would already emit bf16.)
    x2 = x.reshape(B_ * N, C).astype(jnp.bfloat16)

    kernel = functools.partial(
        _window_attn_kernel,
        num_heads=num_heads,
        head_dim=head_dim,
        win_batch=win_batch,
        seq_len=N,
    )

    const2 = lambda b: (0, 0)

    flops = (2 * B_ * N * C * 3 * C                     # fused QKV projection
             + 4 * B_ * num_heads * N * N * head_dim    # QK^T + PV
             + 2 * B_ * N * C * C)                      # output projection
    bytes_accessed = (2 * B_ * N * C * 2                # x in + out, bf16
                      + (C * 3 * C + C * C) * 2         # weights, bf16
                      + 4 * C * 4                       # biases, f32
                      + num_heads * N * N * 4)          # rel-pos bias, f32
    cost = pl.CostEstimate(flops=flops,
                           transcendentals=B_ * num_heads * N * N,
                           bytes_accessed=bytes_accessed)

    vmem_limit = int(min(64 * 1024 * 1024,
                         max(32 * 1024 * 1024,
                             2 * _vmem_bytes_estimate(BN, C, num_heads, N))))

    out2 = pl.pallas_call(
        kernel,
        out_shape=jax.ShapeDtypeStruct((B_ * N, C), jnp.bfloat16),
        grid_spec=pltpu.PrefetchScalarGridSpec(
            num_scalar_prefetch=0,
            grid=(n_blocks,),
            in_specs=[
                pl.BlockSpec((BN, C), lambda b: (b, 0)),               # x rows (streamed)
                pl.BlockSpec((C, 3 * C), const2),                      # fused qkv weight (resident)
                pl.BlockSpec((1, 3 * C), const2),                      # fused qkv bias
                pl.BlockSpec((C, C), const2),                          # out-proj weight
                pl.BlockSpec((1, C), const2),                          # out-proj bias
                pl.BlockSpec((num_heads, N, N), lambda b: (0, 0, 0)),  # rel-pos bias
            ],
            out_specs=pl.BlockSpec((BN, C), lambda b: (b, 0)),
            scratch_shapes=[pltpu.VMEM((BN, 3 * C), jnp.bfloat16)],    # bf16 qkv scratch
        ),
        compiler_params=pltpu.CompilerParams(
            dimension_semantics=("parallel",),
            vmem_limit_bytes=vmem_limit,
        ),
        cost_estimate=cost,
    )(x2, wqkv, bqkv, wp_b, bp, rel_pos_bias)

    return out2.astype(x.dtype).reshape(B_, N, C)


# ----------------------------------------------------------------------------
# Parameter / buffer construction (deterministic)
# ----------------------------------------------------------------------------
def make_relative_position_index(window_size):
    # Matches the spec module exactly (torch.meshgrid(..., indexing='xy')).
    Wh, Ww = window_size
    coords_h = jnp.arange(Wh)
    coords_w = jnp.arange(Ww)
    coords = jnp.stack(jnp.meshgrid(coords_h, coords_w, indexing="xy"))  # (2, Ww, Wh)
    coords_flatten = coords.reshape(2, -1)                               # (2, Wh*Ww)
    relative_coords = coords_flatten[:, :, None] - coords_flatten[:, None, :]
    relative_coords = relative_coords.transpose(1, 2, 0)                 # (N, N, 2)
    rc0 = (relative_coords[..., 0] + Wh - 1) * (2 * Ww - 1)
    rc1 = relative_coords[..., 1] + Ww - 1
    return rc0 + rc1                                                     # (N, N)


def init_params(key, dim, window_size, num_heads):
    Wh, Ww = window_size
    N = Wh * Ww
    keys = jax.random.split(key, 9)
    bound = 1.0 / jnp.sqrt(dim)

    def lin(kw, kb):
        w = jax.random.uniform(kw, (dim, dim), jnp.float32, -bound, bound)
        b = jax.random.uniform(kb, (1, dim), jnp.float32, -bound, bound)
        return w, b

    wq, bq = lin(keys[0], keys[1])
    wk, bk = lin(keys[2], keys[3])
    wv, bv = lin(keys[4], keys[5])
    wp, bp = lin(keys[6], keys[7])

    # relative_position_bias_table: ((2Wh-1)*(2Ww-1), num_heads), trunc_normal std=0.02
    table = 0.02 * jax.random.truncated_normal(
        keys[8], -2.0, 2.0, ((2 * Wh - 1) * (2 * Ww - 1), num_heads), jnp.float32
    )
    idx = make_relative_position_index(window_size)               # (N, N)
    rel_bias = table[idx.reshape(-1)].reshape(N, N, num_heads)    # gather
    rel_bias = rel_bias.transpose(2, 0, 1)                        # (H, N, N)

    return (wq, bq, wk, bk, wv, bv, wp, bp), rel_bias


# ----------------------------------------------------------------------------
# Pure-JAX reference (mirrors the PyTorch forward, mask=None, query=None), f32.
# ----------------------------------------------------------------------------
def reference(x, params, rel_bias, num_heads):
    wq, bq, wk, bk, wv, bv, wp, bp = params
    B_, N, C = x.shape
    hd = C // num_heads
    scale = hd ** (-0.5)
    q = x @ wq + bq
    k = x @ wk + bk
    v = x @ wv + bv
    q = q.reshape(B_, N, num_heads, hd).transpose(0, 2, 1, 3) * scale
    k = k.reshape(B_, N, num_heads, hd).transpose(0, 2, 1, 3)
    v = v.reshape(B_, N, num_heads, hd).transpose(0, 2, 1, 3)
    attn = q @ jnp.swapaxes(k, -2, -1) + rel_bias[None]
    attn = jax.nn.softmax(attn, axis=-1)
    out = (attn @ v).transpose(0, 2, 1, 3).reshape(B_, N, C)
    return out @ wp + bp


# ----------------------------------------------------------------------------
# Main
# ----------------------------------------------------------------------------
if __name__ == "__main__":
    dim = 32
    window_size = (8, 8)
    num_heads = 2
    N = window_size[0] * window_size[1]   # 64
    batch = 2
    num_windows = 4
    B_ = batch * num_windows              # 8  -> n_blocks = 4, win_batch = 2

    key = jax.random.PRNGKey(0)
    k_x, k_p = jax.random.split(key)
    x = jax.random.normal(k_x, (B_, N, dim), jnp.float32)

    params, rel_bias = init_params(k_p, dim, window_size, num_heads)

    out = window_attention(x, params, rel_bias, num_heads=num_heads)
    out = jax.block_until_ready(out)

    ref = reference(x, params, rel_bias, num_heads)
    assert out.shape == (B_, N, dim)
    # bf16 MXU operands and bf16 streamed I/O (f32 accumulation / softmax)
    # => looser tolerance than a pure-f32 implementation.
    assert jnp.allclose(out, ref, atol=5e-2, rtol=5e-2), (
        float(jnp.max(jnp.abs(out - ref)))
    )

    print("KERNEL_OK")
</pallas_src>

<mosaic_0001>
module attributes {stable_mosaic.version = 11 : i64} {
  func.func @_window_attn_kernel(%arg0: i32, %arg1: memref<128x32xbf16, #tpu.memory_space<vmem>>, %arg2: memref<32x96xbf16, #tpu.memory_space<vmem>>, %arg3: memref<1x96xf32, #tpu.memory_space<vmem>>, %arg4: memref<32x32xbf16, #tpu.memory_space<vmem>>, %arg5: memref<1x32xf32, #tpu.memory_space<vmem>>, %arg6: memref<2x64x64xf32, #tpu.memory_space<vmem>>, %arg7: memref<128x32xbf16, #tpu.memory_space<vmem>>, %arg8: memref<128x96xbf16, #tpu.memory_space<vmem>>) attributes {dimension_semantics = [#tpu.dimension_semantics<parallel>], iteration_bounds = array<i64: 4>, scalar_prefetch = 0 : i64, scratch_operands = 1 : i64, tpu.core_type = #tpu.core_type<tc>, window_params = [{transform_indices = @transform_0, window_bounds = array<i64: 128, 32>}, {pipeline_mode = #tpu.pipeline_mode<synchronous>, transform_indices = @transform_1, window_bounds = array<i64: 32, 96>}, {pipeline_mode = #tpu.pipeline_mode<synchronous>, transform_indices = @transform_2, window_bounds = array<i64: 1, 96>}, {pipeline_mode = #tpu.pipeline_mode<synchronous>, transform_indices = @transform_3, window_bounds = array<i64: 32, 32>}, {pipeline_mode = #tpu.pipeline_mode<synchronous>, transform_indices = @transform_4, window_bounds = array<i64: 1, 32>}, {pipeline_mode = #tpu.pipeline_mode<synchronous>, transform_indices = @transform_5, window_bounds = array<i64: 2, 64, 64>}, {transform_indices = @transform_6, window_bounds = array<i64: 128, 32>}]} {
    %c0 = arith.constant 0 : index
    %c0_0 = arith.constant 0 : index
    %0 = vector.load %arg1[%c0, %c0_0] : memref<128x32xbf16, #tpu.memory_space<vmem>>, vector<128x32xbf16>
    %c0_1 = arith.constant 0 : index
    %c0_2 = arith.constant 0 : index
    %1 = vector.load %arg2[%c0_1, %c0_2] : memref<32x96xbf16, #tpu.memory_space<vmem>>, vector<32x96xbf16>
    %cst = arith.constant dense<0.000000e+00> : vector<128x96xf32>
    %2 = tpu.matmul %0, %1, %cst {dimension_numbers = #tpu.dot_dimension_numbers<[1], [0], [0], [1], [0, 0, 1, 1], [], []>} : vector<128x32xbf16>, vector<32x96xbf16>, vector<128x96xf32> -> vector<128x96xf32>
    %c0_3 = arith.constant 0 : index
    %c0_4 = arith.constant 0 : index
    %3 = vector.load %arg3[%c0_3, %c0_4] : memref<1x96xf32, #tpu.memory_space<vmem>>, vector<1x96xf32>
    %4 = vector.broadcast %3 : vector<1x96xf32> to vector<128x96xf32>
    %5 = arith.addf %2, %4 : vector<128x96xf32>
    %6 = arith.truncf %5 : vector<128x96xf32> to vector<128x96xbf16>
    %c0_5 = arith.constant 0 : index
    %c0_6 = arith.constant 0 : index
    %7 = vector.load %arg8[%c0_5, %c0_6] : memref<128x96xbf16, #tpu.memory_space<vmem>>, vector<128x96xbf16>
    tpu.vector_store %arg8[%c0_5, %c0_6], %6 {strides = array<i32>} : memref<128x96xbf16, #tpu.memory_space<vmem>>, vector<128x96xbf16>,
    %cst_7 = arith.constant 0.000000e+00 : f32
    %8 = vector.broadcast %cst_7 : f32 to vector<128x32xf32>
    %c0_8 = arith.constant 0 : index
    %c0_9 = arith.constant 0 : index
    %9 = vector.load %arg8[%c0_8, %c0_9] : memref<128x96xbf16, #tpu.memory_space<vmem>>, vector<128x16xbf16>
    %10 = vector.shape_cast %9 : vector<128x16xbf16> to vector<2x64x16xbf16>
    %c0_10 = arith.constant 0 : index
    %c32 = arith.constant 32 : index
    %11 = vector.load %arg8[%c0_10, %c32] : memref<128x96xbf16, #tpu.memory_space<vmem>>, vector<128x16xbf16>
    %12 = vector.shape_cast %11 : vector<128x16xbf16> to vector<2x64x16xbf16>
    %c0_11 = arith.constant 0 : index
    %c64 = arith.constant 64 : index
    %13 = vector.load %arg8[%c0_11, %c64] : memref<128x96xbf16, #tpu.memory_space<vmem>>, vector<128x16xbf16>
    %14 = vector.shape_cast %13 : vector<128x16xbf16> to vector<2x64x16xbf16>
    "tpu.trace_start"() <{level = 10 : i32, message = "bnd,bmd->bnm"}> : () -> ()
    %cst_12 = arith.constant dense<0.000000e+00> : vector<2x64x64xf32>
    %15 = tpu.matmul %10, %12, %cst_12 {dimension_numbers = #tpu.dot_dimension_numbers<[2], [2], [1], [1], [0, 0, 0, 1, 1, 1], [0], [0]>} : vector<2x64x16xbf16>, vector<2x64x16xbf16>, vector<2x64x64xf32> -> vector<2x64x64xf32>
    "tpu.trace_stop"() : () -> ()
    %c0_13 = arith.constant 0 : index
    %c0_14 = arith.constant 0 : index
    %c0_15 = arith.constant 0 : index
    %16 = vector.load %arg6[%c0_13, %c0_14, %c0_15] : memref<2x64x64xf32, #tpu.memory_space<vmem>>, vector<1x64x64xf32>
    %17 = vector.shape_cast %16 : vector<1x64x64xf32> to vector<64x64xf32>
    %18 = vector.shape_cast %17 : vector<64x64xf32> to vector<1x64x64xf32>
    %19 = vector.broadcast %18 : vector<1x64x64xf32> to vector<2x64x64xf32>
    %20 = arith.addf %15, %19 : vector<2x64x64xf32>
    %cst_16 = arith.constant dense<0xFF800000> : vector<2x64xf32>
    %21 = vector.multi_reduction <maximumf>, %20, %cst_16 [2] : vector<2x64x64xf32> to vector<2x64xf32>
    %22 = vector.shape_cast %21 : vector<2x64xf32> to vector<2x64x1xf32>
    %23 = vector.broadcast %22 : vector<2x64x1xf32> to vector<2x64x64xf32>
    %24 = arith.subf %20, %23 : vector<2x64x64xf32>
    %25 = math.exp %24 : vector<2x64x64xf32>
    %cst_17 = arith.constant dense<0.000000e+00> : vector<2x64xf32>
    %26 = vector.multi_reduction <add>, %25, %cst_17 [2] : vector<2x64x64xf32> to vector<2x64xf32>
    %27 = vector.shape_cast %26 : vector<2x64xf32> to vector<2x64x1xf32>
    %28 = arith.truncf %25 : vector<2x64x64xf32> to vector<2x64x64xbf16>
    "tpu.trace_start"() <{level = 10 : i32, message = "bnm,bmd->bnd"}> : () -> ()
    %cst_18 = arith.constant dense<0.000000e+00> : vector<2x64x16xf32>
    %29 = tpu.matmul %28, %14, %cst_18 {dimension_numbers = #tpu.dot_dimension_numbers<[2], [1], [1], [2], [0, 0, 0, 1, 1, 2], [0], [0]>} : vector<2x64x64xbf16>, vector<2x64x16xbf16>, vector<2x64x16xf32> -> vector<2x64x16xf32>
    "tpu.trace_stop"() : () -> ()
    %30 = tpu.reciprocal %27 : vector<2x64x1xf32> -> vector<2x64x1xf32>
    %31 = vector.broadcast %30 : vector<2x64x1xf32> to vector<2x64x16xf32>
    %32 = arith.mulf %29, %31 : vector<2x64x16xf32>
    %33 = vector.shape_cast %32 : vector<2x64x16xf32> to vector<128x16xf32>
    %34 = arith.truncf %33 : vector<128x16xf32> to vector<128x16xbf16>
    %c0_19 = arith.constant 0 : index
    %c0_20 = arith.constant 0 : index
    %35 = vector.load %arg4[%c0_19, %c0_20] : memref<32x32xbf16, #tpu.memory_space<vmem>>, vector<16x32xbf16>
    %cst_21 = arith.constant dense<0.000000e+00> : vector<128x32xf32>
    %36 = tpu.matmul %34, %35, %cst_21 {dimension_numbers = #tpu.dot_dimension_numbers<[1], [0], [0], [1], [0, 0, 1, 1], [], []>} : vector<128x16xbf16>, vector<16x32xbf16>, vector<128x32xf32> -> vector<128x32xf32>
    %37 = arith.addf %8, %36 : vector<128x32xf32>
    %c0_22 = arith.constant 0 : index
    %c16 = arith.constant 16 : index
    %38 = vector.load %arg8[%c0_22, %c16] : memref<128x96xbf16, #tpu.memory_space<vmem>>, vector<128x16xbf16>
    %39 = vector.shape_cast %38 : vector<128x16xbf16> to vector<2x64x16xbf16>
    %c0_23 = arith.constant 0 : index
    %c48 = arith.constant 48 : index
    %40 = vector.load %arg8[%c0_23, %c48] : memref<128x96xbf16, #tpu.memory_space<vmem>>, vector<128x16xbf16>
    %41 = vector.shape_cast %40 : vector<128x16xbf16> to vector<2x64x16xbf16>
    %c0_24 = arith.constant 0 : index
    %c80 = arith.constant 80 : index
    %42 = vector.load %arg8[%c0_24, %c80] : memref<128x96xbf16, #tpu.memory_space<vmem>>, vector<128x16xbf16>
    %43 = vector.shape_cast %42 : vector<128x16xbf16> to vector<2x64x16xbf16>
    "tpu.trace_start"() <{level = 10 : i32, message = "bnd,bmd->bnm"}> : () -> ()
    %cst_25 = arith.constant dense<0.000000e+00> : vector<2x64x64xf32>
    %44 = tpu.matmul %39, %41, %cst_25 {dimension_numbers = #tpu.dot_dimension_numbers<[2], [2], [1], [1], [0, 0, 0, 1, 1, 1], [0], [0]>} : vector<2x64x16xbf16>, vector<2x64x16xbf16>, vector<2x64x64xf32> -> vector<2x64x64xf32>
    "tpu.trace_stop"() : () -> ()
    %c1 = arith.constant 1 : index
    %c0_26 = arith.constant 0 : index
    %c0_27 = arith.constant 0 : index
    %45 = vector.load %arg6[%c1, %c0_26, %c0_27] : memref<2x64x64xf32, #tpu.memory_space<vmem>>, vector<1x64x64xf32>
    %46 = vector.shape_cast %45 : vector<1x64x64xf32> to vector<64x64xf32>
    %47 = vector.shape_cast %46 : vector<64x64xf32> to vector<1x64x64xf32>
    %48 = vector.broadcast %47 : vector<1x64x64xf32> to vector<2x64x64xf32>
    %49 = arith.addf %44, %48 : vector<2x64x64xf32>
    %cst_28 = arith.constant dense<0xFF800000> : vector<2x64xf32>
    %50 = vector.multi_reduction <maximumf>, %49, %cst_28 [2] : vector<2x64x64xf32> to vector<2x64xf32>
    %51 = vector.shape_cast %50 : vector<2x64xf32> to vector<2x64x1xf32>
    %52 = vector.broadcast %51 : vector<2x64x1xf32> to vector<2x64x64xf32>
    %53 = arith.subf %49, %52 : vector<2x64x64xf32>
    %54 = math.exp %53 : vector<2x64x64xf32>
    %cst_29 = arith.constant dense<0.000000e+00> : vector<2x64xf32>
    %55 = vector.multi_reduction <add>, %54, %cst_29 [2] : vector<2x64x64xf32> to vector<2x64xf32>
    %56 = vector.shape_cast %55 : vector<2x64xf32> to vector<2x64x1xf32>
    %57 = arith.truncf %54 : vector<2x64x64xf32> to vector<2x64x64xbf16>
    "tpu.trace_start"() <{level = 10 : i32, message = "bnm,bmd->bnd"}> : () -> ()
    %cst_30 = arith.constant dense<0.000000e+00> : vector<2x64x16xf32>
    %58 = tpu.matmul %57, %43, %cst_30 {dimension_numbers = #tpu.dot_dimension_numbers<[2], [1], [1], [2], [0, 0, 0, 1, 1, 2], [0], [0]>} : vector<2x64x64xbf16>, vector<2x64x16xbf16>, vector<2x64x16xf32> -> vector<2x64x16xf32>
    "tpu.trace_stop"() : () -> ()
    %59 = tpu.reciprocal %56 : vector<2x64x1xf32> -> vector<2x64x1xf32>
    %60 = vector.broadcast %59 : vector<2x64x1xf32> to vector<2x64x16xf32>
    %61 = arith.mulf %58, %60 : vector<2x64x16xf32>
    %62 = vector.shape_cast %61 : vector<2x64x16xf32> to vector<128x16xf32>
    %63 = arith.truncf %62 : vector<128x16xf32> to vector<128x16xbf16>
    %c16_31 = arith.constant 16 : index
    %c0_32 = arith.constant 0 : index
    %64 = vector.load %arg4[%c16_31, %c0_32] : memref<32x32xbf16, #tpu.memory_space<vmem>>, vector<16x32xbf16>
    %cst_33 = arith.constant dense<0.000000e+00> : vector<128x32xf32>
    %65 = tpu.matmul %63, %64, %cst_33 {dimension_numbers = #tpu.dot_dimension_numbers<[1], [0], [0], [1], [0, 0, 1, 1], [], []>} : vector<128x16xbf16>, vector<16x32xbf16>, vector<128x32xf32> -> vector<128x32xf32>
    %66 = arith.addf %37, %65 : vector<128x32xf32>
    %c0_34 = arith.constant 0 : index
    %c0_35 = arith.constant 0 : index
    %67 = vector.load %arg5[%c0_34, %c0_35] : memref<1x32xf32, #tpu.memory_space<vmem>>, vector<1x32xf32>
    %68 = vector.broadcast %67 : vector<1x32xf32> to vector<128x32xf32>
    %69 = arith.addf %66, %68 : vector<128x32xf32>
    %70 = arith.truncf %69 : vector<128x32xf32> to vector<128x32xbf16>
    %c0_36 = arith.constant 0 : index
    %c0_37 = arith.constant 0 : index
    %71 = vector.load %arg7[%c0_36, %c0_37] : memref<128x32xbf16, #tpu.memory_space<vmem>>, vector<128x32xbf16>
    tpu.vector_store %arg7[%c0_36, %c0_37], %70 {strides = array<i32>} : memref<128x32xbf16, #tpu.memory_space<vmem>>, vector<128x32xbf16>,
    return
  }
  func.func @transform_0(%arg0: i32) -> (i32, i32) {
    %c0_i32 = arith.constant 0 : i32
    %c0_i32_0 = arith.constant 0 : i32
    return %arg0, %c0_i32 : i32, i32
  }
  func.func @transform_1(%arg0: i32) -> (i32, i32) {
    %c0_i32 = arith.constant 0 : i32
    %c0_i32_0 = arith.constant 0 : i32
    %c0_i32_1 = arith.constant 0 : i32
    return %c0_i32, %c0_i32_0 : i32, i32
  }
  func.func @transform_2(%arg0: i32) -> (i32, i32) {
    %c0_i32 = arith.constant 0 : i32
    %c0_i32_0 = arith.constant 0 : i32
    %c0_i32_1 = arith.constant 0 : i32
    return %c0_i32, %c0_i32_0 : i32, i32
  }
  func.func @transform_3(%arg0: i32) -> (i32, i32) {
    %c0_i32 = arith.constant 0 : i32
    %c0_i32_0 = arith.constant 0 : i32
    %c0_i32_1 = arith.constant 0 : i32
    return %c0_i32, %c0_i32_0 : i32, i32
  }
  func.func @transform_4(%arg0: i32) -> (i32, i32) {
    %c0_i32 = arith.constant 0 : i32
    %c0_i32_0 = arith.constant 0 : i32
    %c0_i32_1 = arith.constant 0 : i32
    return %c0_i32, %c0_i32_0 : i32, i32
  }
  func.func @transform_5(%arg0: i32) -> (i32, i32, i32) {
    %c0_i32 = arith.constant 0 : i32
    %c0_i32_0 = arith.constant 0 : i32
    %c0_i32_1 = arith.constant 0 : i32
    %c0_i32_2 = arith.constant 0 : i32
    return %c0_i32, %c0_i32_0, %c0_i32_1 : i32, i32, i32
  }
  func.func @transform_6(%arg0: i32) -> (i32, i32) {
    %c0_i32 = arith.constant 0 : i32
    %c0_i32_0 = arith.constant 0 : i32
    return %arg0, %c0_i32 : i32, i32
  }
}

</mosaic_0001>

<llo_original>
// kernel: tpu_custom_call.1
$region0: #{tpu_custom_call.1}
  #allocation0 [shape = 'u32[]', space=smem, size = 0x4, offset = 0x4, fixed_abs, tag = 'smem constant byte address 0x4 - core index']
  #allocation1 [shape = 'u32[144,128]{1,0:T(1,128)}', space=vmem, size = 0x12000, scoped, tag = 'internal scratch']
  #allocation2 [shape = 'bf16[128,96]{1,0:T(8,128)(2,1)}', space=vmem, size = 0x8000, scoped, tag = 'scratch operand']
  %s0 = inlined_call_operand.vmem [shape: bf16[512,32], index: 0, kind: input, shape index: {}]
  %s1 = inlined_call_operand.vmem [shape: bf16[32,96], index: 1, kind: input, shape index: {}]
  %s2 = inlined_call_operand.vmem [shape: f32[1,96], index: 2, kind: input, shape index: {}]
  %s3 = inlined_call_operand.vmem [shape: bf16[32,32], index: 3, kind: input, shape index: {}]
  %s4 = inlined_call_operand.vmem [shape: f32[1,32], index: 4, kind: input, shape index: {}]
  %s5 = inlined_call_operand.vmem [shape: f32[2,64,64], index: 5, kind: input, shape index: {}]
  %s6 = inlined_call_operand.vmem [shape: bf16[512,32], index: 6, kind: output, shape index: {}]
  %s7 = sld [smem:[#allocation0]]
  $region57: #{tpu_custom_call.1} parent=0
    _
  %s9 = ssub.s32 1, %s7
  %s10 = scalar_select 0, %s9, %s7
  loop: start=0, step=1, limit=6
  $region2: #{tpu_custom_call.1} parent=0 // loop_pre_header
    _
  $region3: #{tpu_custom_call.1} parent=0 // loop_header
    %s12 = sphi 0, %s16
    %p13 = scmp.ge.s32.totalorder %s12, 6
    %s22 = sphi 0, %s24
    %s25 = sphi 0, %s22
    %s26 = sphi 0, %s25
    %s42 = sphi 0, %s26
    %s46 = sphi 0, %s46
    %s48 = sphi 0, %s46
    %s49 = sphi 0, %s48
    %s63 = sphi 0, %s49
    %s67 = sphi 0, %s67
    %s69 = sphi 0, %s67
    %s70 = sphi 0, %s69
    %s84 = sphi 0, %s70
    %s88 = sphi 0, %s88
    %s90 = sphi 0, %s88
    %s91 = sphi 0, %s90
    %s105 = sphi 0, %s91
    %s109 = sphi 0, %s109
    %s111 = sphi 0, %s109
    %s112 = sphi 0, %s111
    %s126 = sphi 0, %s112
    %s130 = sphi 0, %s130
    %s132 = sphi 0, %s130
    %s133 = sphi 0, %s132
    %s147 = sphi 0, %s133
    %s153 = sphi 0, %s155
    %s156 = sphi 0, %s153
    %s157 = sphi 0, %s156
    %s173 = sphi 0, %s157
  $region4: #{tpu_custom_call.1} parent=0 // loop_header_branch
    %15 = sbr.rel (%p13) target = $region8
  $region5: #{tpu_custom_call.1} parent=0 // loop_body
    %s17 = ssub.s32 %s12, 1
    %s18 = ssub.s32 %s12, 2
    %s19 = sadd.s32 %s12, 1
    %s20 = ssub.s32 %s12, %s19
    %p21 = scmp.eq.s32.totalorder %s20, 0
    %s23 = sadd.s32 %s22, 1
    %s24 = scalar_select %p21, %s22, %s23
    %p27 = pneg %p21
    %p28 = scmp.eq.s32.totalorder %s12, 3
    %p29 = por %p27, %p28
    %p30 = scmp.ne.s32.totalorder %s22, %s25
    %p31 = scmp.eq.s32.totalorder %s12, 0
    %p32 = por %p30, %p31
    %p33 = scmp.ne.s32.totalorder %s22, %s25
    %p34 = scmp.eq.s32.totalorder %s17, 3
    %p35 = por %p33, %p34
    %p36 = scmp.ne.s32.totalorder %s25, %s26
    %p37 = scmp.eq.s32.totalorder %s17, 0
    %p38 = por %p36, %p37
    %p39 = scmp.ne.s32.totalorder %s25, %s26
    %p40 = scmp.eq.s32.totalorder %s18, 3
    %p41 = por %p39, %p40
    %p43 = scmp.ne.s32.totalorder %s26, %s42
    %p44 = scmp.eq.s32.totalorder %s18, 0
    %p45 = por %p43, %p44
    %s47 = sadd.s32 %s46, 1
    %p50 = scmp.eq.s32.totalorder %s12, 3
    %p51 = scmp.ne.s32.totalorder %s46, %s48
    %p52 = scmp.eq.s32.totalorder %s12, 0
    %p53 = por %p51, %p52
    %p54 = scmp.ne.s32.totalorder %s46, %s48
    %p55 = scmp.eq.s32.totalorder %s17, 3
    %p56 = por %p54, %p55
    %p57 = scmp.ne.s32.totalorder %s48, %s49
    %p58 = scmp.eq.s32.totalorder %s17, 0
    %p59 = por %p57, %p58
    %p60 = scmp.ne.s32.totalorder %s48, %s49
    %p61 = scmp.eq.s32.totalorder %s18, 3
    %p62 = por %p60, %p61
    %p64 = scmp.ne.s32.totalorder %s49, %s63
    %p65 = scmp.eq.s32.totalorder %s18, 0
    %p66 = por %p64, %p65
    %s68 = sadd.s32 %s67, 1
    %p71 = scmp.eq.s32.totalorder %s12, 3
    %p72 = scmp.ne.s32.totalorder %s67, %s69
    %p73 = scmp.eq.s32.totalorder %s12, 0
    %p74 = por %p72, %p73
    %p75 = scmp.ne.s32.totalorder %s67, %s69
    %p76 = scmp.eq.s32.totalorder %s17, 3
    %p77 = por %p75, %p76
    %p78 = scmp.ne.s32.totalorder %s69, %s70
    %p79 = scmp.eq.s32.totalorder %s17, 0
    %p80 = por %p78, %p79
    %p81 = scmp.ne.s32.totalorder %s69, %s70
    %p82 = scmp.eq.s32.totalorder %s18, 3
    %p83 = por %p81, %p82
    %p85 = scmp.ne.s32.totalorder %s70, %s84
    %p86 = scmp.eq.s32.totalorder %s18, 0
    %p87 = por %p85, %p86
    %s89 = sadd.s32 %s88, 1
    %p92 = scmp.eq.s32.totalorder %s12, 3
    %p93 = scmp.ne.s32.totalorder %s88, %s90
    %p94 = scmp.eq.s32.totalorder %s12, 0
    %p95 = por %p93, %p94
    %p96 = scmp.ne.s32.totalorder %s88, %s90
    %p97 = scmp.eq.s32.totalorder %s17, 3
    %p98 = por %p96, %p97
    %p99 = scmp.ne.s32.totalorder %s90, %s91
    %p100 = scmp.eq.s32.totalorder %s17, 0
    %p101 = por %p99, %p100
    %p102 = scmp.ne.s32.totalorder %s90, %s91
    %p103 = scmp.eq.s32.totalorder %s18, 3
    %p104 = por %p102, %p103
    %p106 = scmp.ne.s32.totalorder %s91, %s105
    %p107 = scmp.eq.s32.totalorder %s18, 0
    %p108 = por %p106, %p107
    %s110 = sadd.s32 %s109, 1
    %p113 = scmp.eq.s32.totalorder %s12, 3
    %p114 = scmp.ne.s32.totalorder %s109, %s111
    %p115 = scmp.eq.s32.totalorder %s12, 0
    %p116 = por %p114, %p115
    %p117 = scmp.ne.s32.totalorder %s109, %s111
    %p118 = scmp.eq.s32.totalorder %s17, 3
    %p119 = por %p117, %p118
    %p120 = scmp.ne.s32.totalorder %s111, %s112
    %p121 = scmp.eq.s32.totalorder %s17, 0
    %p122 = por %p120, %p121
    %p123 = scmp.ne.s32.totalorder %s111, %s112
    %p124 = scmp.eq.s32.totalorder %s18, 3
    %p125 = por %p123, %p124
    %p127 = scmp.ne.s32.totalorder %s112, %s126
    %p128 = scmp.eq.s32.totalorder %s18, 0
    %p129 = por %p127, %p128
    %s131 = sadd.s32 %s130, 1
    %p134 = scmp.eq.s32.totalorder %s12, 3
    %p135 = scmp.ne.s32.totalorder %s130, %s132
    %p136 = scmp.eq.s32.totalorder %s12, 0
    %p137 = por %p135, %p136
    %p138 = scmp.ne.s32.totalorder %s130, %s132
    %p139 = scmp.eq.s32.totalorder %s17, 3
    %p140 = por %p138, %p139
    %p141 = scmp.ne.s32.totalorder %s132, %s133
    %p142 = scmp.eq.s32.totalorder %s17, 0
    %p143 = por %p141, %p142
    %p144 = scmp.ne.s32.totalorder %s132, %s133
    %p145 = scmp.eq.s32.totalorder %s18, 3
    %p146 = por %p144, %p145
    %p148 = scmp.ne.s32.totalorder %s133, %s147
    %p149 = scmp.eq.s32.totalorder %s18, 0
    %p150 = por %p148, %p149
    %s151 = ssub.s32 %s12, %s19
    %p152 = scmp.eq.s32.totalorder %s151, 0
    %s154 = sadd.s32 %s153, 1
    %s155 = scalar_select %p152, %s153, %s154
    %p158 = pneg %p152
    %p159 = scmp.eq.s32.totalorder %s12, 3
    %p160 = por %p158, %p159
    %p161 = scmp.ne.s32.totalorder %s153, %s156
    %p162 = scmp.eq.s32.totalorder %s12, 0
    %p163 = por %p161, %p162
    %p164 = scmp.ne.s32.totalorder %s153, %s156
    %p165 = scmp.eq.s32.totalorder %s17, 3
    %p166 = por %p164, %p165
    %p167 = scmp.ne.s32.totalorder %s156, %s157
    %p168 = scmp.eq.s32.totalorder %s17, 0
    %p169 = por %p167, %p168
    %p170 = scmp.ne.s32.totalorder %s156, %s157
    %p171 = scmp.eq.s32.totalorder %s18, 3
    %p172 = por %p170, %p171
    %p174 = scmp.ne.s32.totalorder %s157, %s173
    %p175 = scmp.eq.s32.totalorder %s18, 0
    %p176 = por %p174, %p175
    %p177 = scmp.le.s32.totalorder 1, %s12
    %p178 = scmp.lt.s32.totalorder %s12, 5
    %p179 = pnand %p177, %p178
    %p180 = pneg %p179
    // Predicated region
    $region9: #{tpu_custom_call.1} parent=5 // pred_check
      _
    $region10: #{tpu_custom_call.1} parent=5 // pred_check_branch
      %182 = sbr.rel (%p179) target = $region12
    $region11: #{tpu_custom_call.1} parent=5 // pred_region
      %s183 = ssub.s32 %s12, 1
      // Predicated region
      $region13: #{tpu_custom_call.1} parent=11 // pred_check
        %p184 = pneg %p59
      $region14: #{tpu_custom_call.1} parent=11 // pred_check_branch
        %186 = sbr.rel (%p184) target = $region16
      $region15: #{tpu_custom_call.1} parent=11 // pred_region
        _
      $region16: #{tpu_custom_call.1} parent=11 // pred_fallthru
        _
      // Predicated region
      $region17: #{tpu_custom_call.1} parent=11 // pred_check
        %p187 = pneg %p80
      $region18: #{tpu_custom_call.1} parent=11 // pred_check_branch
        %189 = sbr.rel (%p187) target = $region20
      $region19: #{tpu_custom_call.1} parent=11 // pred_region
        _
      $region20: #{tpu_custom_call.1} parent=11 // pred_fallthru
        _
      // Predicated region
      $region21: #{tpu_custom_call.1} parent=11 // pred_check
        %p190 = pneg %p101
      $region22: #{tpu_custom_call.1} parent=11 // pred_check_branch
        %192 = sbr.rel (%p190) target = $region24
      $region23: #{tpu_custom_call.1} parent=11 // pred_region
        _
      $region24: #{tpu_custom_call.1} parent=11 // pred_fallthru
        _
      // Predicated region
      $region25: #{tpu_custom_call.1} parent=11 // pred_check
        %p193 = pneg %p122
      $region26: #{tpu_custom_call.1} parent=11 // pred_check_branch
        %195 = sbr.rel (%p193) target = $region28
      $region27: #{tpu_custom_call.1} parent=11 // pred_region
        _
      $region28: #{tpu_custom_call.1} parent=11 // pred_fallthru
        _
      // Predicated region
      $region29: #{tpu_custom_call.1} parent=11 // pred_check
        %p196 = pneg %p143
      $region30: #{tpu_custom_call.1} parent=11 // pred_check_branch
        %198 = sbr.rel (%p196) target = $region32
      $region31: #{tpu_custom_call.1} parent=11 // pred_region
        _
      $region32: #{tpu_custom_call.1} parent=11 // pred_fallthru
        _
    $region12: #{tpu_custom_call.1} parent=5 // pred_fallthru
      _
    %p199 = scmp.lt.s32.totalorder %s12, 4
    // Predicated region
    $region33: #{tpu_custom_call.1} parent=5 // pred_check
      %p200 = pneg %p199
    $region34: #{tpu_custom_call.1} parent=5 // pred_check_branch
      %202 = sbr.rel (%p200) target = $region36
    $region35: #{tpu_custom_call.1} parent=5 // pred_region
      // Predicated region
      $region37: #{tpu_custom_call.1} parent=35 // pred_check
        %p203 = pneg %p32
      $region38: #{tpu_custom_call.1} parent=35 // pred_check_branch
        %205 = sbr.rel (%p203) target = $region40
      $region39: #{tpu_custom_call.1} parent=35 // pred_region
        %s206 = smul.u32 16, %s12
        %p207 = scmp.lt.s32.totalorder %s206, 63
        %s208 = scalar_select %p207, %s206, 63
        %s209 = smul.addr %s208, 4
        %s210 = scalar_lea.vmem %s0, %s209
        %s211 = smul.u32 16, %s12
      $region40: #{tpu_custom_call.1} parent=35 // pred_fallthru
        _
    $region36: #{tpu_custom_call.1} parent=5 // pred_fallthru
      _
    %p212 = scmp.le.s32.totalorder 1, %s12
    %p213 = scmp.lt.s32.totalorder %s12, 5
    %p214 = pnand %p212, %p213
    %p215 = pneg %p214
    // Predicated region
    $region41: #{tpu_custom_call.1} parent=5 // pred_check
      _
    $region42: #{tpu_custom_call.1} parent=5 // pred_check_branch
      %217 = sbr.rel (%p214) target = $region44
    $region43: #{tpu_custom_call.1} parent=5 // pred_region
      %s218 = ssub.s32 %s12, 1
      %s219 = smul.u32 16, %s17
      %p220 = scmp.lt.s32.totalorder %s219, 63
      %s221 = scalar_select %p220, %s219, 63
      %s222 = smul.addr %s221, 4
      %s223 = scalar_lea.vmem %s0, %s222
      %p224 = pneg %p38
      %p225 = pneg %p35
      %p226 = pneg %p59
      %p227 = pneg %p56
      %p228 = pneg %p80
      %p229 = pneg %p77
      %p230 = pneg %p101
      %p231 = pneg %p98
      %p232 = pneg %p122
      %p233 = pneg %p119
      %p234 = pneg %p143
      %p235 = pneg %p140
      %p236 = pneg %p169
      %p237 = pneg %p166
      %s238 = smul.u32 16, %s17
      %p239 = scmp.lt.s32.totalorder %s238, 63
      %s240 = scalar_select %p239, %s238, 63
      %s241 = smul.addr %s240, 4
      %s242 = scalar_lea.vmem %s6, %s241
      %s243 = smul.u32 16, %s17
      %p244 = scmp.lt.s32.totalorder %s243, 63
      %s245 = scalar_select %p244, %s243, 63
      %s246 = smul.addr %s245, 4
      %s247 = scalar_lea.vmem %s0, %s246
      %s248 = smul.u32 16, %s17
      %s249 = smul.u32 16, %s17
      %p250 = scmp.lt.s32.totalorder %s249, 63
      %s251 = scalar_select %p250, %s249, 63
      %s252 = smul.addr %s251, 4
      %s253 = scalar_lea.vmem %s6, %s252
      %s254 = smul.u32 16, %s17
      %v256 = vld [vmem:[%s247] sm:$0xf]
      %v257 = vld [vmem:[%s247 + $0x4] sm:$0xf]
      %v258 = vld [vmem:[%s247 + $0x8] sm:$0xf]
      %v259 = vld [vmem:[%s247 + $0xc] sm:$0xf]
      %v260 = vld [vmem:[%s247 + $0x10] sm:$0xf]
      %v261 = vld [vmem:[%s247 + $0x14] sm:$0xf]
      %v262 = vld [vmem:[%s247 + $0x18] sm:$0xf]
      %v263 = vld [vmem:[%s247 + $0x1c] sm:$0xf]
      %v264 = vld [vmem:[%s247 + $0x20] sm:$0xf]
      %v265 = vld [vmem:[%s247 + $0x24] sm:$0xf]
      %v266 = vld [vmem:[%s247 + $0x28] sm:$0xf]
      %v267 = vld [vmem:[%s247 + $0x2c] sm:$0xf]
      %v268 = vld [vmem:[%s247 + $0x30] sm:$0xf]
      %v269 = vld [vmem:[%s247 + $0x34] sm:$0xf]
      %v270 = vld [vmem:[%s247 + $0x38] sm:$0xf]
      %v271 = vld [vmem:[%s247 + $0x3c] sm:$0xf]
      %v272 = vld [vmem:[%s1] sm:$0xf]
      %v273 = vld [vmem:[%s1 + $0x4] sm:$0xf]
      %v274 = vld [vmem:[%s1 + $0x8] sm:$0xf]
      %v275 = vld [vmem:[%s1 + $0xc] sm:$0xf]
      %v276 = vld [vmem:[%s2] sm:$0x1]
      %v278 = vlaneseq
      %v279 = vshrl.u32 %v278, 7
      %v280 = vsub.s32 0, %v279
      %v281 = vrot.slane %v276, %v280
      %v299 = vunpack.c.l.b16 %v256
      %v300 = vunpack.c.l.b16 %v257
      %v301 = vunpack.c.l.b16 %v258
      %v302 = vunpack.c.l.b16 %v259
      %v303 = vunpack.c.l.b16 %v260
      %v304 = vunpack.c.l.b16 %v261
      %v305 = vunpack.c.l.b16 %v262
      %v306 = vunpack.c.l.b16 %v263
      %v307 = vunpack.c.l.b16 %v264
      %v308 = vunpack.c.l.b16 %v265
      %v309 = vunpack.c.l.b16 %v266
      %v310 = vunpack.c.l.b16 %v267
      %v311 = vunpack.c.l.b16 %v268
      %v312 = vunpack.c.l.b16 %v269
      %v313 = vunpack.c.l.b16 %v270
      %v314 = vunpack.c.l.b16 %v271
      %v315 = vpack.c.b16 %v300, %v299
      %v316 = vpack.c.b16 %v302, %v301
      %v317 = vpack.c.b16 %v304, %v303
      %v318 = vpack.c.b16 %v306, %v305
      %v319 = vpack.c.b16 %v308, %v307
      %v320 = vpack.c.b16 %v310, %v309
      %v321 = vpack.c.b16 %v312, %v311
      %v322 = vpack.c.b16 %v314, %v313
      %v327 = vunpack.c.l.b16 %v272
      %v328 = vunpack.c.l.b16 %v273
      %v329 = vunpack.c.l.b16 %v274
      %v330 = vunpack.c.l.b16 %v275
      %v331 = vpack.c.b16 %v328, %v327
      %v332 = vpack.c.b16 %v330, %v329
      %vm335 = vcmask 261120
      %v337 = vsel %vm335, %v315, 0
      %v340 = vsel %vm335, %v316, 0
      %v343 = vsel %vm335, %v317, 0
      %v346 = vsel %vm335, %v318, 0
      %v349 = vsel %vm335, %v319, 0
      %v352 = vsel %vm335, %v320, 0
      %v355 = vsel %vm335, %v321, 0
      %v358 = vsel %vm335, %v322, 0
      %360 = vmatprep.subr.bf16.mxu0 0
      %361 = vmatpush1.bf16.msra.mxu0 0
      %362 = vmatprep.subr.bf16.mxu0 0
      %363 = vmatpush1.bf16.msra.mxu0 0
      %364 = vmatprep.subr.bf16.mxu0 0
      %365 = vmatpush1.bf16.msra.mxu0 0
      %366 = vmatprep.subr.bf16.mxu0 0
      %367 = vmatpush1.bf16.msra.mxu0 0
      %368 = vmatprep.subr.bf16.mxu0 0
      %369 = vmatpush1.bf16.msra.mxu0 0
      %370 = vmatprep.subr.bf16.mxu0 0
      %371 = vmatpush1.bf16.msra.mxu0 0
      %372 = vmatprep.subr.bf16.mxu0 0
      %373 = vmatpush1.bf16.msra.mxu0 %v332
      %374 = vmatprep.subr.bf16.mxu0 0
      %375 = vmatpush1.bf16.msra.mxu0 %v331
      %376 = vmatprep.subr.bf16.mxu0 0
      %377 = vmatpush2.bf16.msra.mxu0 0
      %378 = vmatprep.subr.bf16.mxu0 0
      %379 = vmatpush2.bf16.msra.mxu0 0
      %380 = vmatprep.subr.bf16.mxu0 0
      %381 = vmatpush2.bf16.msra.mxu0 0
      %382 = vmatprep.subr.bf16.mxu0 0
      %383 = vmatpush2.bf16.msra.mxu0 0
      %384 = vmatprep.subr.bf16.mxu0 0
      %385 = vmatpush2.bf16.msra.mxu0 0
      %386 = vmatprep.subr.bf16.mxu0 0
      %387 = vmatpush2.bf16.msra.mxu0 0
      %388 = vmatprep.subr.bf16.mxu0 0
      %389 = vmatpush2.bf16.msra.mxu0 0
      %390 = vmatprep.subr.bf16.mxu0 0
      %391 = vmatpush2.bf16.msra.mxu0 0
      %392 = vmatprep.mubr.bf16.mxu0 0
      %393 = vmatmul.mubr.bf16.gmra.mxu0 %v337
      %v394 = vpop.f32.mrf.mxu0
      %v395 = vadd.f32 %v281, %v394
      %v396 = vpop.f32.mrf.mxu0
      %v397 = vpop.f32.mrf.mxu0
      %v398 = vadd.f32 %v281, %v397
      %v399 = vpop.f32.mrf.mxu0
      %400 = vmatprep.mubr.bf16.mxu0 0
      %401 = vmatmul.mubr.bf16.gmra.mxu0 %v340
      %v402 = vpop.f32.mrf.mxu0
      %v403 = vadd.f32 %v281, %v402
      %v404 = vpop.f32.mrf.mxu0
      %v405 = vpop.f32.mrf.mxu0
      %v406 = vadd.f32 %v281, %v405
      %v407 = vpop.f32.mrf.mxu0
      %408 = vmatprep.mubr.bf16.mxu0 0
      %409 = vmatmul.mubr.bf16.gmra.mxu0 %v343
      %v410 = vpop.f32.mrf.mxu0
      %v411 = vadd.f32 %v281, %v410
      %v412 = vpop.f32.mrf.mxu0
      %v413 = vpop.f32.mrf.mxu0
      %v414 = vadd.f32 %v281, %v413
      %v415 = vpop.f32.mrf.mxu0
      %416 = vmatprep.mubr.bf16.mxu0 0
      %417 = vmatmul.mubr.bf16.gmra.mxu0 %v346
      %v418 = vpop.f32.mrf.mxu0
      %v419 = vadd.f32 %v281, %v418
      %v420 = vpop.f32.mrf.mxu0
      %v421 = vpop.f32.mrf.mxu0
      %v422 = vadd.f32 %v281, %v421
      %v423 = vpop.f32.mrf.mxu0
      %424 = vmatprep.mubr.bf16.mxu0 0
      %425 = vmatmul.mubr.bf16.gmra.mxu0 %v349
      %v426 = vpop.f32.mrf.mxu0
      %v427 = vadd.f32 %v281, %v426
      %v428 = vpop.f32.mrf.mxu0
      %v429 = vpop.f32.mrf.mxu0
      %v430 = vadd.f32 %v281, %v429
      %v431 = vpop.f32.mrf.mxu0
      %432 = vmatprep.mubr.bf16.mxu0 0
      %433 = vmatmul.mubr.bf16.gmra.mxu0 %v352
      %v434 = vpop.f32.mrf.mxu0
      %v435 = vadd.f32 %v281, %v434
      %v436 = vpop.f32.mrf.mxu0
      %v437 = vpop.f32.mrf.mxu0
      %v438 = vadd.f32 %v281, %v437
      %v439 = vpop.f32.mrf.mxu0
      %440 = vmatprep.mubr.bf16.mxu0 0
      %441 = vmatmul.mubr.bf16.gmra.mxu0 %v355
      %v442 = vpop.f32.mrf.mxu0
      %v443 = vadd.f32 %v281, %v442
      %v444 = vpop.f32.mrf.mxu0
      %v445 = vpop.f32.mrf.mxu0
      %v446 = vadd.f32 %v281, %v445
      %v447 = vpop.f32.mrf.mxu0
      %448 = vmatprep.mubr.bf16.mxu0 0
      %449 = vmatmul.mubr.bf16.gmra.mxu0 %v358
      %v450 = vpop.f32.mrf.mxu0
      %v451 = vadd.f32 %v281, %v450
      %v452 = vpop.f32.mrf.mxu0
      %v453 = vpop.f32.mrf.mxu0
      %v454 = vadd.f32 %v281, %v453
      %v455 = vpop.f32.mrf.mxu0
      %456 = vdwg.mxu0
      %v457 = vpack.c.bf16 %v398, %v395
      %v458 = vpack.c.bf16 %v406, %v403
      %v459 = vpack.c.bf16 %v414, %v411
      %v460 = vpack.c.bf16 %v422, %v419
      %v461 = vpack.c.bf16 %v430, %v427
      %v462 = vpack.c.bf16 %v438, %v435
      %v463 = vpack.c.bf16 %v446, %v443
      %v464 = vpack.c.bf16 %v454, %v451
      %v473 = vunpack.c.l.b16 %v457
      %v474 = vunpack.c.h.b16 %v457
      %v475 = vunpack.c.l.b16 %v458
      %v476 = vunpack.c.h.b16 %v458
      %v477 = vunpack.c.l.b16 %v459
      %v478 = vunpack.c.h.b16 %v459
      %v479 = vunpack.c.l.b16 %v460
      %v480 = vunpack.c.h.b16 %v460
      %v481 = vunpack.c.l.b16 %v461
      %v482 = vunpack.c.h.b16 %v461
      %v483 = vunpack.c.l.b16 %v462
      %v484 = vunpack.c.h.b16 %v462
      %v485 = vunpack.c.l.b16 %v463
      %v486 = vunpack.c.h.b16 %v463
      %v487 = vunpack.c.l.b16 %v464
      %v488 = vunpack.c.h.b16 %v464
      %v489 = vpack.c.b16 %v473, %v473
      %v490 = vpack.c.b16 %v474, %v474
      %v491 = vpack.c.b16 %v475, %v475
      %v492 = vpack.c.b16 %v476, %v476
      %v493 = vpack.c.b16 %v477, %v477
      %v494 = vpack.c.b16 %v478, %v478
      %v495 = vpack.c.b16 %v479, %v479
      %v496 = vpack.c.b16 %v480, %v480
      %v497 = vpack.c.b16 %v481, %v481
      %v498 = vpack.c.b16 %v482, %v482
      %v499 = vpack.c.b16 %v483, %v483
      %v500 = vpack.c.b16 %v484, %v484
      %v501 = vpack.c.b16 %v485, %v485
      %v502 = vpack.c.b16 %v486, %v486
      %v503 = vpack.c.b16 %v487, %v487
      %v504 = vpack.c.b16 %v488, %v488
      %vm521 = vcmask 781312
      %522 = vst.msk [vmem:[#allocation2] sm:$0xf] %vm521, %v489
      %523 = vst.msk [vmem:[#allocation2 + $0x4] sm:$0xf] %vm521, %v490
      %524 = vst.msk [vmem:[#allocation2 + $0x8] sm:$0xf] %vm521, %v491
      %525 = vst.msk [vmem:[#allocation2 + $0xc] sm:$0xf] %vm521, %v492
      %526 = vst.msk [vmem:[#allocation2 + $0x10] sm:$0xf] %vm521, %v493
      %527 = vst.msk [vmem:[#allocation2 + $0x14] sm:$0xf] %vm521, %v494
      %528 = vst.msk [vmem:[#allocation2 + $0x18] sm:$0xf] %vm521, %v495
      %529 = vst.msk [vmem:[#allocation2 + $0x1c] sm:$0xf] %vm521, %v496
      %530 = vst.msk [vmem:[#allocation2 + $0x20] sm:$0xf] %vm521, %v497
      %531 = vst.msk [vmem:[#allocation2 + $0x24] sm:$0xf] %vm521, %v498
      %532 = vst.msk [vmem:[#allocation2 + $0x28] sm:$0xf] %vm521, %v499
      %533 = vst.msk [vmem:[#allocation2 + $0x2c] sm:$0xf] %vm521, %v500
      %534 = vst.msk [vmem:[#allocation2 + $0x30] sm:$0xf] %vm521, %v501
      %535 = vst.msk [vmem:[#allocation2 + $0x34] sm:$0xf] %vm521, %v502
      %536 = vst.msk [vmem:[#allocation2 + $0x38] sm:$0xf] %vm521, %v503
      %537 = vst.msk [vmem:[#allocation2 + $0x3c] sm:$0xf] %vm521, %v504
      %v538 = vld [vmem:[#allocation2] sm:$0xf]
      %v539 = vld [vmem:[#allocation2 + $0x4] sm:$0xf]
      %v540 = vld [vmem:[#allocation2 + $0x8] sm:$0xf]
      %v541 = vld [vmem:[#allocation2 + $0xc] sm:$0xf]
      %v542 = vld [vmem:[#allocation2 + $0x10] sm:$0xf]
      %v543 = vld [vmem:[#allocation2 + $0x14] sm:$0xf]
      %v544 = vld [vmem:[#allocation2 + $0x18] sm:$0xf]
      %v545 = vld [vmem:[#allocation2 + $0x1c] sm:$0xf]
      %v546 = vld [vmem:[#allocation2 + $0x20] sm:$0xf]
      %v547 = vld [vmem:[#allocation2 + $0x24] sm:$0xf]
      %v548 = vld [vmem:[#allocation2 + $0x28] sm:$0xf]
      %v549 = vld [vmem:[#allocation2 + $0x2c] sm:$0xf]
      %v550 = vld [vmem:[#allocation2 + $0x30] sm:$0xf]
      %v551 = vld [vmem:[#allocation2 + $0x34] sm:$0xf]
      %v552 = vld [vmem:[#allocation2 + $0x38] sm:$0xf]
      %v553 = vld [vmem:[#allocation2 + $0x3c] sm:$0xf]
      %v554 = vld [vmem:[%s5] sm:$0xff]
      %v555 = vld [vmem:[%s5 + $0x8] sm:$0xff]
      %v556 = vld [vmem:[%s5 + $0x10] sm:$0xff]
      %v557 = vld [vmem:[%s5 + $0x18] sm:$0xff]
      %v558 = vld [vmem:[%s5 + $0x20] sm:$0xff]
      %v559 = vld [vmem:[%s5 + $0x28] sm:$0xff]
      %v560 = vld [vmem:[%s5 + $0x30] sm:$0xff]
      %v561 = vld [vmem:[%s5 + $0x38] sm:$0xff]
      %v570 = vunpack.c.l.b16 %v538
      %v571 = vunpack.c.l.b16 %v539
      %v572 = vunpack.c.l.b16 %v540
      %v573 = vunpack.c.l.b16 %v541
      %v574 = vunpack.c.l.b16 %v542
      %v575 = vunpack.c.l.b16 %v543
      %v576 = vunpack.c.l.b16 %v544
      %v577 = vunpack.c.l.b16 %v545
      %v578 = vpack.c.b16 %v571, %v570
      %v579 = vpack.c.b16 %v573, %v572
      %v580 = vpack.c.b16 %v575, %v574
      %v581 = vpack.c.b16 %v577, %v576
      %582 = vrot.lane.b32.xlu0 %v578, 96
      %v583 = vpop.permute.xlu0 %582
      %584 = vrot.lane.b32.xlu0 %v579, 96
      %v585 = vpop.permute.xlu0 %584
      %586 = vrot.lane.b32.xlu0 %v580, 96
      %v587 = vpop.permute.xlu0 %586
      %588 = vrot.lane.b32.xlu0 %v581, 96
      %v589 = vpop.permute.xlu0 %588
      %vm590 = vcmask 130048
      %v592 = vsel %vm590, %v578, 0
      %v595 = vsel %vm590, %v579, 0
      %v598 = vsel %vm590, %v580, 0
      %v601 = vsel %vm590, %v581, 0
      %v604 = vsel %vm590, %v583, 0
      %v607 = vsel %vm590, %v585, 0
      %v610 = vsel %vm590, %v587, 0
      %v613 = vsel %vm590, %v589, 0
      %615 = vmatprep.subr.bf16.mxu0 0
      %616 = vmatpush1.bf16.xpose.msra.mxu0 0
      %617 = vmatprep.subr.bf16.mxu0 0
      %618 = vmatpush1.bf16.xpose.msra.mxu0 0
      %619 = vmatprep.subr.bf16.mxu0 0
      %620 = vmatpush1.bf16.xpose.msra.mxu0 0
      %621 = vmatprep.subr.bf16.mxu0 0
      %622 = vmatpush1.bf16.xpose.msra.mxu0 0
      %623 = vmatprep.subr.bf16.mxu0 0
      %624 = vmatpush1.bf16.xpose.msra.mxu0 %v613
      %625 = vmatprep.subr.bf16.mxu0 0
      %626 = vmatpush1.bf16.xpose.msra.mxu0 %v610
      %627 = vmatprep.subr.bf16.mxu0 0
      %628 = vmatpush1.bf16.xpose.msra.mxu0 %v607
      %629 = vmatprep.subr.bf16.mxu0 0
      %630 = vmatpush1.bf16.xpose.msra.mxu0 %v604
      %631 = vmatprep.subr.bf16.mxu0 0
      %632 = vmatpush2.bf16.xpose.msra.mxu0 0
      %633 = vmatprep.subr.bf16.mxu0 0
      %634 = vmatpush2.bf16.xpose.msra.mxu0 0
      %635 = vmatprep.subr.bf16.mxu0 0
      %636 = vmatpush2.bf16.xpose.msra.mxu0 0
      %637 = vmatprep.subr.bf16.mxu0 0
      %638 = vmatpush2.bf16.xpose.msra.mxu0 0
      %639 = vmatprep.subr.bf16.mxu0 0
      %640 = vmatpush2.bf16.xpose.msra.mxu0 0
      %641 = vmatprep.subr.bf16.mxu0 0
      %642 = vmatpush2.bf16.xpose.msra.mxu0 0
      %643 = vmatprep.subr.bf16.mxu0 0
      %644 = vmatpush2.bf16.xpose.msra.mxu0 0
      %645 = vmatprep.subr.bf16.mxu0 0
      %646 = vmatpush2.bf16.xpose.msra.mxu0 0
      %647 = vmatprep.mubr.bf16.mxu0 0
      %648 = vmatmul.mubr.bf16.gmra.mxu0 %v592
      %v649 = vpop.f32.mrf.mxu0
      %v650 = vadd.f32 %v554, %v649
      %v651 = vpop.f32.mrf.mxu0
      %v652 = vpop.f32.mrf.mxu0
      %v653 = vadd.f32 %v555, %v652
      %v654 = vpop.f32.mrf.mxu0
      %655 = vmatprep.mubr.bf16.mxu0 0
      %656 = vmatmul.mubr.bf16.gmra.mxu0 %v595
      %v657 = vpop.f32.mrf.mxu0
      %v658 = vadd.f32 %v556, %v657
      %v659 = vpop.f32.mrf.mxu0
      %v660 = vpop.f32.mrf.mxu0
      %v661 = vadd.f32 %v557, %v660
      %v662 = vpop.f32.mrf.mxu0
      %663 = vmatprep.mubr.bf16.mxu0 0
      %664 = vmatmul.mubr.bf16.gmra.mxu0 %v598
      %v665 = vpop.f32.mrf.mxu0
      %v666 = vadd.f32 %v558, %v665
      %v667 = vpop.f32.mrf.mxu0
      %v668 = vpop.f32.mrf.mxu0
      %v669 = vadd.f32 %v559, %v668
      %v670 = vpop.f32.mrf.mxu0
      %671 = vmatprep.mubr.bf16.mxu0 0
      %672 = vmatmul.mubr.bf16.gmra.mxu0 %v601
      %v673 = vpop.f32.mrf.mxu0
      %v674 = vadd.f32 %v560, %v673
      %v675 = vpop.f32.mrf.mxu0
      %v676 = vpop.f32.mrf.mxu0
      %v677 = vadd.f32 %v561, %v676
      %v678 = vpop.f32.mrf.mxu0
      %679 = vdwg.mxu0
      %v688 = vunpack.c.l.b16 %v546
      %v689 = vunpack.c.l.b16 %v547
      %v690 = vunpack.c.l.b16 %v548
      %v691 = vunpack.c.l.b16 %v549
      %v692 = vunpack.c.l.b16 %v550
      %v693 = vunpack.c.l.b16 %v551
      %v694 = vunpack.c.l.b16 %v552
      %v695 = vunpack.c.l.b16 %v553
      %v696 = vpack.c.b16 %v689, %v688
      %v697 = vpack.c.b16 %v691, %v690
      %v698 = vpack.c.b16 %v693, %v692
      %v699 = vpack.c.b16 %v695, %v694
      %700 = vrot.lane.b32.xlu0 %v696, 96
      %v701 = vpop.permute.xlu0 %700
      %702 = vrot.lane.b32.xlu0 %v697, 96
      %v703 = vpop.permute.xlu0 %702
      %704 = vrot.lane.b32.xlu0 %v698, 96
      %v705 = vpop.permute.xlu0 %704
      %706 = vrot.lane.b32.xlu0 %v699, 96
      %v707 = vpop.permute.xlu0 %706
      %v709 = vsel %vm590, %v696, 0
      %v712 = vsel %vm590, %v697, 0
      %v715 = vsel %vm590, %v698, 0
      %v718 = vsel %vm590, %v699, 0
      %v721 = vsel %vm590, %v701, 0
      %v724 = vsel %vm590, %v703, 0
      %v727 = vsel %vm590, %v705, 0
      %v730 = vsel %vm590, %v707, 0
      %732 = vmatprep.subr.bf16.mxu0 0
      %733 = vmatpush1.bf16.xpose.msra.mxu0 0
      %734 = vmatprep.subr.bf16.mxu0 0
      %735 = vmatpush1.bf16.xpose.msra.mxu0 0
      %736 = vmatprep.subr.bf16.mxu0 0
      %737 = vmatpush1.bf16.xpose.msra.mxu0 0
      %738 = vmatprep.subr.bf16.mxu0 0
      %739 = vmatpush1.bf16.xpose.msra.mxu0 0
      %740 = vmatprep.subr.bf16.mxu0 0
      %741 = vmatpush1.bf16.xpose.msra.mxu0 %v730
      %742 = vmatprep.subr.bf16.mxu0 0
      %743 = vmatpush1.bf16.xpose.msra.mxu0 %v727
      %744 = vmatprep.subr.bf16.mxu0 0
      %745 = vmatpush1.bf16.xpose.msra.mxu0 %v724
      %746 = vmatprep.subr.bf16.mxu0 0
      %747 = vmatpush1.bf16.xpose.msra.mxu0 %v721
      %748 = vmatprep.subr.bf16.mxu0 0
      %749 = vmatpush2.bf16.xpose.msra.mxu0 0
      %750 = vmatprep.subr.bf16.mxu0 0
      %751 = vmatpush2.bf16.xpose.msra.mxu0 0
      %752 = vmatprep.subr.bf16.mxu0 0
      %753 = vmatpush2.bf16.xpose.msra.mxu0 0
      %754 = vmatprep.subr.bf16.mxu0 0
      %755 = vmatpush2.bf16.xpose.msra.mxu0 0
      %756 = vmatprep.subr.bf16.mxu0 0
      %757 = vmatpush2.bf16.xpose.msra.mxu0 0
      %758 = vmatprep.subr.bf16.mxu0 0
      %759 = vmatpush2.bf16.xpose.msra.mxu0 0
      %760 = vmatprep.subr.bf16.mxu0 0
      %761 = vmatpush2.bf16.xpose.msra.mxu0 0
      %762 = vmatprep.subr.bf16.mxu0 0
      %763 = vmatpush2.bf16.xpose.msra.mxu0 0
      %764 = vmatprep.mubr.bf16.mxu0 0
      %765 = vmatmul.mubr.bf16.gmra.mxu0 %v709
      %v766 = vpop.f32.mrf.mxu0
      %v767 = vadd.f32 %v554, %v766
      %v768 = vpop.f32.mrf.mxu0
      %v769 = vpop.f32.mrf.mxu0
      %v770 = vadd.f32 %v555, %v769
      %v771 = vpop.f32.mrf.mxu0
      %772 = vmatprep.mubr.bf16.mxu0 0
      %773 = vmatmul.mubr.bf16.gmra.mxu0 %v712
      %v774 = vpop.f32.mrf.mxu0
      %v775 = vadd.f32 %v556, %v774
      %v776 = vpop.f32.mrf.mxu0
      %v777 = vpop.f32.mrf.mxu0
      %v778 = vadd.f32 %v557, %v777
      %v779 = vpop.f32.mrf.mxu0
      %780 = vmatprep.mubr.bf16.mxu0 0
      %781 = vmatmul.mubr.bf16.gmra.mxu0 %v715
      %v782 = vpop.f32.mrf.mxu0
      %v783 = vadd.f32 %v558, %v782
      %v784 = vpop.f32.mrf.mxu0
      %v785 = vpop.f32.mrf.mxu0
      %v786 = vadd.f32 %v559, %v785
      %v787 = vpop.f32.mrf.mxu0
      %788 = vmatprep.mubr.bf16.mxu0 0
      %789 = vmatmul.mubr.bf16.gmra.mxu0 %v718
      %v790 = vpop.f32.mrf.mxu0
      %v791 = vadd.f32 %v560, %v790
      %v792 = vpop.f32.mrf.mxu0
      %v793 = vpop.f32.mrf.mxu0
      %v794 = vadd.f32 %v561, %v793
      %v795 = vpop.f32.mrf.mxu0
      %796 = vdwg.mxu0
      %vm797 = vcmask 523264
      %v798 = vsel %vm797, %v650, -inf
      %799 = vmax.xlane.f32.xlu0 %v798
      %v800 = vpop.xlane.xlu0 %799
      %v801 = vsel %vm797, %v653, -inf
      %802 = vmax.xlane.f32.xlu0 %v801
      %v803 = vpop.xlane.xlu0 %802
      %v804 = vsel %vm797, %v658, -inf
      %805 = vmax.xlane.f32.xlu0 %v804
      %v806 = vpop.xlane.xlu0 %805
      %v807 = vsel %vm797, %v661, -inf
      %808 = vmax.xlane.f32.xlu0 %v807
      %v809 = vpop.xlane.xlu0 %808
      %v810 = vsel %vm797, %v666, -inf
      %811 = vmax.xlane.f32.xlu0 %v810
      %v812 = vpop.xlane.xlu0 %811
      %v813 = vsel %vm797, %v669, -inf
      %814 = vmax.xlane.f32.xlu0 %v813
      %v815 = vpop.xlane.xlu0 %814
      %v816 = vsel %vm797, %v674, -inf
      %817 = vmax.xlane.f32.xlu0 %v816
      %v818 = vpop.xlane.xlu0 %817
      %v819 = vsel %vm797, %v677, -inf
      %820 = vmax.xlane.f32.xlu0 %v819
      %v821 = vpop.xlane.xlu0 %820
      %v822 = vsel %vm797, %v767, -inf
      %823 = vmax.xlane.f32.xlu0 %v822
      %v824 = vpop.xlane.xlu0 %823
      %v825 = vsel %vm797, %v770, -inf
      %826 = vmax.xlane.f32.xlu0 %v825
      %v827 = vpop.xlane.xlu0 %826
      %v828 = vsel %vm797, %v775, -inf
      %829 = vmax.xlane.f32.xlu0 %v828
      %v830 = vpop.xlane.xlu0 %829
      %v831 = vsel %vm797, %v778, -inf
      %832 = vmax.xlane.f32.xlu0 %v831
      %v833 = vpop.xlane.xlu0 %832
      %v834 = vsel %vm797, %v783, -inf
      %835 = vmax.xlane.f32.xlu0 %v834
      %v836 = vpop.xlane.xlu0 %835
      %v837 = vsel %vm797, %v786, -inf
      %838 = vmax.xlane.f32.xlu0 %v837
      %v839 = vpop.xlane.xlu0 %838
      %v840 = vsel %vm797, %v791, -inf
      %841 = vmax.xlane.f32.xlu0 %v840
      %v842 = vpop.xlane.xlu0 %841
      %v843 = vsel %vm797, %v794, -inf
      %844 = vmax.xlane.f32.xlu0 %v843
      %v845 = vpop.xlane.xlu0 %844
      %v846 = vsub.f32 %v650, %v800
      %v847 = vsub.f32 %v653, %v803
      %v848 = vsub.f32 %v658, %v806
      %v849 = vsub.f32 %v661, %v809
      %v850 = vsub.f32 %v666, %v812
      %v851 = vsub.f32 %v669, %v815
      %v852 = vsub.f32 %v674, %v818
      %v853 = vsub.f32 %v677, %v821
      %v854 = vsub.f32 %v767, %v824
      %v855 = vsub.f32 %v770, %v827
      %v856 = vsub.f32 %v775, %v830
      %v857 = vsub.f32 %v778, %v833
      %v858 = vsub.f32 %v783, %v836
      %v859 = vsub.f32 %v786, %v839
      %v860 = vsub.f32 %v791, %v842
      %v861 = vsub.f32 %v794, %v845
      %v862 = vmul.f32 %v846, 1.442695
      %v863 = vpow.pop %v862
      %v864 = vmul.f32 %v847, 1.442695
      %v865 = vpow.pop %v864
      %v866 = vmul.f32 %v848, 1.442695
      %v867 = vpow.pop %v866
      %v868 = vmul.f32 %v849, 1.442695
      %v869 = vpow.pop %v868
      %v870 = vmul.f32 %v850, 1.442695
      %v871 = vpow.pop %v870
      %v872 = vmul.f32 %v851, 1.442695
      %v873 = vpow.pop %v872
      %v874 = vmul.f32 %v852, 1.442695
      %v875 = vpow.pop %v874
      %v876 = vmul.f32 %v853, 1.442695
      %v877 = vpow.pop %v876
      %v878 = vmul.f32 %v854, 1.442695
      %v879 = vpow.pop %v878
      %v880 = vmul.f32 %v855, 1.442695
      %v881 = vpow.pop %v880
      %v882 = vmul.f32 %v856, 1.442695
      %v883 = vpow.pop %v882
      %v884 = vmul.f32 %v857, 1.442695
      %v885 = vpow.pop %v884
      %v886 = vmul.f32 %v858, 1.442695
      %v887 = vpow.pop %v886
      %v888 = vmul.f32 %v859, 1.442695
      %v889 = vpow.pop %v888
      %v890 = vmul.f32 %v860, 1.442695
      %v891 = vpow.pop %v890
      %v892 = vmul.f32 %v861, 1.442695
      %v893 = vpow.pop %v892
      %v894 = vsel %vm797, %v863, 0.0
      %895 = vadd.xlane.f32.xlu0 %v894
      %v896 = vpop.xlane.xlu0 %895
      %v897 = vsel %vm797, %v865, 0.0
      %898 = vadd.xlane.f32.xlu0 %v897
      %v899 = vpop.xlane.xlu0 %898
      %v900 = vsel %vm797, %v867, 0.0
      %901 = vadd.xlane.f32.xlu0 %v900
      %v902 = vpop.xlane.xlu0 %901
      %v903 = vsel %vm797, %v869, 0.0
      %904 = vadd.xlane.f32.xlu0 %v903
      %v905 = vpop.xlane.xlu0 %904
      %v906 = vsel %vm797, %v871, 0.0
      %907 = vadd.xlane.f32.xlu0 %v906
      %v908 = vpop.xlane.xlu0 %907
      %v909 = vsel %vm797, %v873, 0.0
      %910 = vadd.xlane.f32.xlu0 %v909
      %v911 = vpop.xlane.xlu0 %910
      %v912 = vsel %vm797, %v875, 0.0
      %913 = vadd.xlane.f32.xlu0 %v912
      %v914 = vpop.xlane.xlu0 %913
      %v915 = vsel %vm797, %v877, 0.0
      %916 = vadd.xlane.f32.xlu0 %v915
      %v917 = vpop.xlane.xlu0 %916
      %v918 = vsel %vm797, %v879, 0.0
      %919 = vadd.xlane.f32.xlu0 %v918
      %v920 = vpop.xlane.xlu0 %919
      %v921 = vsel %vm797, %v881, 0.0
      %922 = vadd.xlane.f32.xlu0 %v921
      %v923 = vpop.xlane.xlu0 %922
      %v924 = vsel %vm797, %v883, 0.0
      %925 = vadd.xlane.f32.xlu0 %v924
      %v926 = vpop.xlane.xlu0 %925
      %v927 = vsel %vm797, %v885, 0.0
      %928 = vadd.xlane.f32.xlu0 %v927
      %v929 = vpop.xlane.xlu0 %928
      %v930 = vsel %vm797, %v887, 0.0
      %931 = vadd.xlane.f32.xlu0 %v930
      %v932 = vpop.xlane.xlu0 %931
      %v933 = vsel %vm797, %v889, 0.0
      %934 = vadd.xlane.f32.xlu0 %v933
      %v935 = vpop.xlane.xlu0 %934
      %v936 = vsel %vm797, %v891, 0.0
      %937 = vadd.xlane.f32.xlu0 %v936
      %v938 = vpop.xlane.xlu0 %937
      %v939 = vsel %vm797, %v893, 0.0
      %940 = vadd.xlane.f32.xlu0 %v939
      %v941 = vpop.xlane.xlu0 %940
      %v942 = vpack.c.bf16 %v865, %v863
      %v943 = vpack.c.bf16 %v869, %v867
      %v944 = vpack.c.bf16 %v873, %v871
      %v945 = vpack.c.bf16 %v877, %v875
      %v946 = vpack.c.bf16 %v881, %v879
      %v947 = vpack.c.bf16 %v885, %v883
      %v948 = vpack.c.bf16 %v889, %v887
      %v949 = vpack.c.bf16 %v893, %v891
      %950 = vrot.lane.b32.xlu0 %v578, 64
      %v951 = vpop.permute.xlu0 %950
      %952 = vrot.lane.b32.xlu0 %v579, 64
      %v953 = vpop.permute.xlu0 %952
      %954 = vrot.lane.b32.xlu0 %v580, 64
      %v955 = vpop.permute.xlu0 %954
      %956 = vrot.lane.b32.xlu0 %v581, 64
      %v957 = vpop.permute.xlu0 %956
      %v963 = vsel %vm797, %v942, 0
      %v966 = vsel %vm797, %v943, 0
      %v969 = vsel %vm797, %v944, 0
      %v972 = vsel %vm797, %v945, 0
      %974 = vmatprep.subr.bf16.mxu0 0
      %975 = vmatpush1.bf16.msra.mxu0 0
      %976 = vmatprep.subr.bf16.mxu0 0
      %977 = vmatpush1.bf16.msra.mxu0 0
      %978 = vmatprep.subr.bf16.mxu0 0
      %979 = vmatpush1.bf16.msra.mxu0 0
      %980 = vmatprep.subr.bf16.mxu0 0
      %981 = vmatpush1.bf16.msra.mxu0 0
      %982 = vmatprep.subr.bf16.mxu0 0
      %983 = vmatpush1.bf16.msra.mxu0 %v957
      %984 = vmatprep.subr.bf16.mxu0 0
      %985 = vmatpush1.bf16.msra.mxu0 %v955
      %986 = vmatprep.subr.bf16.mxu0 0
      %987 = vmatpush1.bf16.msra.mxu0 %v953
      %988 = vmatprep.subr.bf16.mxu0 0
      %989 = vmatpush1.bf16.msra.mxu0 %v951
      %990 = vmatprep.subr.bf16.mxu0 0
      %991 = vmatpush2.bf16.msra.mxu0 0
      %992 = vmatprep.subr.bf16.mxu0 0
      %993 = vmatpush2.bf16.msra.mxu0 0
      %994 = vmatprep.subr.bf16.mxu0 0
      %995 = vmatpush2.bf16.msra.mxu0 0
      %996 = vmatprep.subr.bf16.mxu0 0
      %997 = vmatpush2.bf16.msra.mxu0 0
      %998 = vmatprep.subr.bf16.mxu0 0
      %999 = vmatpush2.bf16.msra.mxu0 0
      %1000 = vmatprep.subr.bf16.mxu0 0
      %1001 = vmatpush2.bf16.msra.mxu0 0
      %1002 = vmatprep.subr.bf16.mxu0 0
      %1003 = vmatpush2.bf16.msra.mxu0 0
      %1004 = vmatprep.subr.bf16.mxu0 0
      %1005 = vmatpush2.bf16.msra.mxu0 0
      %1006 = vmatprep.mubr.bf16.mxu0 0
      %1007 = vmatmul.mubr.bf16.gmra.mxu0 %v963
      %v1008 = vpop.f32.mrf.mxu0
      %v1009 = vadd.f32 0.0, %v1008
      %v1010 = vpop.f32.mrf.mxu0
      %v1011 = vpop.f32.mrf.mxu0
      %v1012 = vadd.f32 0.0, %v1011
      %v1013 = vpop.f32.mrf.mxu0
      %1014 = vmatprep.mubr.bf16.mxu0 0
      %1015 = vmatmul.mubr.bf16.gmra.mxu0 %v966
      %v1016 = vpop.f32.mrf.mxu0
      %v1017 = vadd.f32 0.0, %v1016
      %v1018 = vpop.f32.mrf.mxu0
      %v1019 = vpop.f32.mrf.mxu0
      %v1020 = vadd.f32 0.0, %v1019
      %v1021 = vpop.f32.mrf.mxu0
      %1022 = vmatprep.mubr.bf16.mxu0 0
      %1023 = vmatmul.mubr.bf16.gmra.mxu0 %v969
      %v1024 = vpop.f32.mrf.mxu0
      %v1025 = vadd.f32 0.0, %v1024
      %v1026 = vpop.f32.mrf.mxu0
      %v1027 = vpop.f32.mrf.mxu0
      %v1028 = vadd.f32 0.0, %v1027
      %v1029 = vpop.f32.mrf.mxu0
      %1030 = vmatprep.mubr.bf16.mxu0 0
      %1031 = vmatmul.mubr.bf16.gmra.mxu0 %v972
      %v1032 = vpop.f32.mrf.mxu0
      %v1033 = vadd.f32 0.0, %v1032
      %v1034 = vpop.f32.mrf.mxu0
      %v1035 = vpop.f32.mrf.mxu0
      %v1036 = vadd.f32 0.0, %v1035
      %v1037 = vpop.f32.mrf.mxu0
      %1038 = vdwg.mxu0
      %1039 = vrot.lane.b32.xlu0 %v696, 64
      %v1040 = vpop.permute.xlu0 %1039
      %1041 = vrot.lane.b32.xlu0 %v697, 64
      %v1042 = vpop.permute.xlu0 %1041
      %1043 = vrot.lane.b32.xlu0 %v698, 64
      %v1044 = vpop.permute.xlu0 %1043
      %1045 = vrot.lane.b32.xlu0 %v699, 64
      %v1046 = vpop.permute.xlu0 %1045
      %v1052 = vsel %vm797, %v946, 0
      %v1055 = vsel %vm797, %v947, 0
      %v1058 = vsel %vm797, %v948, 0
      %v1061 = vsel %vm797, %v949, 0
      %1063 = vmatprep.subr.bf16.mxu0 0
      %1064 = vmatpush1.bf16.msra.mxu0 0
      %1065 = vmatprep.subr.bf16.mxu0 0
      %1066 = vmatpush1.bf16.msra.mxu0 0
      %1067 = vmatprep.subr.bf16.mxu0 0
      %1068 = vmatpush1.bf16.msra.mxu0 0
      %1069 = vmatprep.subr.bf16.mxu0 0
      %1070 = vmatpush1.bf16.msra.mxu0 0
      %1071 = vmatprep.subr.bf16.mxu0 0
      %1072 = vmatpush1.bf16.msra.mxu0 %v1046
      %1073 = vmatprep.subr.bf16.mxu0 0
      %1074 = vmatpush1.bf16.msra.mxu0 %v1044
      %1075 = vmatprep.subr.bf16.mxu0 0
      %1076 = vmatpush1.bf16.msra.mxu0 %v1042
      %1077 = vmatprep.subr.bf16.mxu0 0
      %1078 = vmatpush1.bf16.msra.mxu0 %v1040
      %1079 = vmatprep.subr.bf16.mxu0 0
      %1080 = vmatpush2.bf16.msra.mxu0 0
      %1081 = vmatprep.subr.bf16.mxu0 0
      %1082 = vmatpush2.bf16.msra.mxu0 0
      %1083 = vmatprep.subr.bf16.mxu0 0
      %1084 = vmatpush2.bf16.msra.mxu0 0
      %1085 = vmatprep.subr.bf16.mxu0 0
      %1086 = vmatpush2.bf16.msra.mxu0 0
      %1087 = vmatprep.subr.bf16.mxu0 0
      %1088 = vmatpush2.bf16.msra.mxu0 0
      %1089 = vmatprep.subr.bf16.mxu0 0
      %1090 = vmatpush2.bf16.msra.mxu0 0
      %1091 = vmatprep.subr.bf16.mxu0 0
      %1092 = vmatpush2.bf16.msra.mxu0 0
      %1093 = vmatprep.subr.bf16.mxu0 0
      %1094 = vmatpush2.bf16.msra.mxu0 0
      %1095 = vmatprep.mubr.bf16.mxu0 0
      %1096 = vmatmul.mubr.bf16.gmra.mxu0 %v1052
      %v1097 = vpop.f32.mrf.mxu0
      %v1098 = vadd.f32 0.0, %v1097
      %v1099 = vpop.f32.mrf.mxu0
      %v1100 = vpop.f32.mrf.mxu0
      %v1101 = vadd.f32 0.0, %v1100
      %v1102 = vpop.f32.mrf.mxu0
      %1103 = vmatprep.mubr.bf16.mxu0 0
      %1104 = vmatmul.mubr.bf16.gmra.mxu0 %v1055
      %v1105 = vpop.f32.mrf.mxu0
      %v1106 = vadd.f32 0.0, %v1105
      %v1107 = vpop.f32.mrf.mxu0
      %v1108 = vpop.f32.mrf.mxu0
      %v1109 = vadd.f32 0.0, %v1108
      %v1110 = vpop.f32.mrf.mxu0
      %1111 = vmatprep.mubr.bf16.mxu0 0
      %1112 = vmatmul.mubr.bf16.gmra.mxu0 %v1058
      %v1113 = vpop.f32.mrf.mxu0
      %v1114 = vadd.f32 0.0, %v1113
      %v1115 = vpop.f32.mrf.mxu0
      %v1116 = vpop.f32.mrf.mxu0
      %v1117 = vadd.f32 0.0, %v1116
      %v1118 = vpop.f32.mrf.mxu0
      %1119 = vmatprep.mubr.bf16.mxu0 0
      %1120 = vmatmul.mubr.bf16.gmra.mxu0 %v1061
      %v1121 = vpop.f32.mrf.mxu0
      %v1122 = vadd.f32 0.0, %v1121
      %v1123 = vpop.f32.mrf.mxu0
      %v1124 = vpop.f32.mrf.mxu0
      %v1125 = vadd.f32 0.0, %v1124
      %v1126 = vpop.f32.mrf.mxu0
      %1127 = vdwg.mxu0
      %v1128 = vrcp.pop %v896
      %v1129 = vrcp.pop %v899
      %v1130 = vrcp.pop %v902
      %v1131 = vrcp.pop %v905
      %v1132 = vrcp.pop %v908
      %v1133 = vrcp.pop %v911
      %v1134 = vrcp.pop %v914
      %v1135 = vrcp.pop %v917
      %v1136 = vrcp.pop %v920
      %v1137 = vrcp.pop %v923
      %v1138 = vrcp.pop %v926
      %v1139 = vrcp.pop %v929
      %v1140 = vrcp.pop %v932
      %v1141 = vrcp.pop %v935
      %v1142 = vrcp.pop %v938
      %v1143 = vrcp.pop %v941
      %v1144 = vmul.f32 %v1009, %v1128
      %v1145 = vmul.f32 %v1012, %v1129
      %v1146 = vmul.f32 %v1017, %v1130
      %v1147 = vmul.f32 %v1020, %v1131
      %v1148 = vmul.f32 %v1025, %v1132
      %v1149 = vmul.f32 %v1028, %v1133
      %v1150 = vmul.f32 %v1033, %v1134
      %v1151 = vmul.f32 %v1036, %v1135
      %v1152 = vmul.f32 %v1098, %v1136
      %v1153 = vmul.f32 %v1101, %v1137
      %v1154 = vmul.f32 %v1106, %v1138
      %v1155 = vmul.f32 %v1109, %v1139
      %v1156 = vmul.f32 %v1114, %v1140
      %v1157 = vmul.f32 %v1117, %v1141
      %v1158 = vmul.f32 %v1122, %v1142
      %v1159 = vmul.f32 %v1125, %v1143
      %v1160 = vpack.c.bf16 %v1145, %v1144
      %v1161 = vpack.c.bf16 %v1147, %v1146
      %v1162 = vpack.c.bf16 %v1149, %v1148
      %v1163 = vpack.c.bf16 %v1151, %v1150
      %v1164 = vpack.c.bf16 %v1153, %v1152
      %v1165 = vpack.c.bf16 %v1155, %v1154
      %v1166 = vpack.c.bf16 %v1157, %v1156
      %v1167 = vpack.c.bf16 %v1159, %v1158
      %v1168 = vld [vmem:[%s3] sm:$0xf]
      %v1169 = vld [vmem:[%s3 + $0x4] sm:$0xf]
      %v1170 = vld [vmem:[#allocation2] sm:$0xf]
      %v1171 = vld [vmem:[#allocation2 + $0x4] sm:$0xf]
      %v1172 = vld [vmem:[#allocation2 + $0x8] sm:$0xf]
      %v1173 = vld [vmem:[#allocation2 + $0xc] sm:$0xf]
      %v1174 = vld [vmem:[#allocation2 + $0x10] sm:$0xf]
      %v1175 = vld [vmem:[#allocation2 + $0x14] sm:$0xf]
      %v1176 = vld [vmem:[#allocation2 + $0x18] sm:$0xf]
      %v1177 = vld [vmem:[#allocation2 + $0x1c] sm:$0xf]
      %v1178 = vld [vmem:[#allocation2 + $0x20] sm:$0xf]
      %v1179 = vld [vmem:[#allocation2 + $0x24] sm:$0xf]
      %v1180 = vld [vmem:[#allocation2 + $0x28] sm:$0xf]
      %v1181 = vld [vmem:[#allocation2 + $0x2c] sm:$0xf]
      %v1182 = vld [vmem:[#allocation2 + $0x30] sm:$0xf]
      %v1183 = vld [vmem:[#allocation2 + $0x34] sm:$0xf]
      %v1184 = vld [vmem:[#allocation2 + $0x38] sm:$0xf]
      %v1185 = vld [vmem:[#allocation2 + $0x3c] sm:$0xf]
      %s1186 = scalar_lea.vmem %s5, 64
      %v1187 = vld [vmem:[%s1186] sm:$0xff]
      %v1188 = vld [vmem:[%s1186 + $0x8] sm:$0xff]
      %v1189 = vld [vmem:[%s1186 + $0x10] sm:$0xff]
      %v1190 = vld [vmem:[%s1186 + $0x18] sm:$0xff]
      %v1191 = vld [vmem:[%s1186 + $0x20] sm:$0xff]
      %v1192 = vld [vmem:[%s1186 + $0x28] sm:$0xff]
      %v1193 = vld [vmem:[%s1186 + $0x30] sm:$0xff]
      %v1194 = vld [vmem:[%s1186 + $0x38] sm:$0xff]
      %v1203 = vunpack.c.l.b16 %v1170
      %v1204 = vunpack.c.l.b16 %v1171
      %v1205 = vunpack.c.l.b16 %v1172
      %v1206 = vunpack.c.l.b16 %v1173
      %v1207 = vunpack.c.l.b16 %v1174
      %v1208 = vunpack.c.l.b16 %v1175
      %v1209 = vunpack.c.l.b16 %v1176
      %v1210 = vunpack.c.l.b16 %v1177
      %v1211 = vpack.c.b16 %v1204, %v1203
      %v1212 = vpack.c.b16 %v1206, %v1205
      %v1213 = vpack.c.b16 %v1208, %v1207
      %v1214 = vpack.c.b16 %v1210, %v1209
      %1215 = vrot.lane.b32.xlu0 %v1211, 112
      %v1216 = vpop.permute.xlu0 %1215
      %1217 = vrot.lane.b32.xlu0 %v1212, 112
      %v1218 = vpop.permute.xlu0 %1217
      %1219 = vrot.lane.b32.xlu0 %v1213, 112
      %v1220 = vpop.permute.xlu0 %1219
      %1221 = vrot.lane.b32.xlu0 %v1214, 112
      %v1222 = vpop.permute.xlu0 %1221
      %1223 = vrot.lane.b32.xlu0 %v1211, 80
      %v1224 = vpop.permute.xlu0 %1223
      %1225 = vrot.lane.b32.xlu0 %v1212, 80
      %v1226 = vpop.permute.xlu0 %1225
      %1227 = vrot.lane.b32.xlu0 %v1213, 80
      %v1228 = vpop.permute.xlu0 %1227
      %1229 = vrot.lane.b32.xlu0 %v1214, 80
      %v1230 = vpop.permute.xlu0 %1229
      %v1232 = vsel %vm590, %v1216, 0
      %v1235 = vsel %vm590, %v1218, 0
      %v1238 = vsel %vm590, %v1220, 0
      %v1241 = vsel %vm590, %v1222, 0
      %v1244 = vsel %vm590, %v1224, 0
      %v1247 = vsel %vm590, %v1226, 0
      %v1250 = vsel %vm590, %v1228, 0
      %v1253 = vsel %vm590, %v1230, 0
      %1255 = vmatprep.subr.bf16.mxu0 0
      %1256 = vmatpush1.bf16.xpose.msra.mxu0 0
      %1257 = vmatprep.subr.bf16.mxu0 0
      %1258 = vmatpush1.bf16.xpose.msra.mxu0 0
      %1259 = vmatprep.subr.bf16.mxu0 0
      %1260 = vmatpush1.bf16.xpose.msra.mxu0 0
      %1261 = vmatprep.subr.bf16.mxu0 0
      %1262 = vmatpush1.bf16.xpose.msra.mxu0 0
      %1263 = vmatprep.subr.bf16.mxu0 0
      %1264 = vmatpush1.bf16.xpose.msra.mxu0 %v1253
      %1265 = vmatprep.subr.bf16.mxu0 0
      %1266 = vmatpush1.bf16.xpose.msra.mxu0 %v1250
      %1267 = vmatprep.subr.bf16.mxu0 0
      %1268 = vmatpush1.bf16.xpose.msra.mxu0 %v1247
      %1269 = vmatprep.subr.bf16.mxu0 0
      %1270 = vmatpush1.bf16.xpose.msra.mxu0 %v1244
      %1271 = vmatprep.subr.bf16.mxu0 0
      %1272 = vmatpush2.bf16.xpose.msra.mxu0 0
      %1273 = vmatprep.subr.bf16.mxu0 0
      %1274 = vmatpush2.bf16.xpose.msra.mxu0 0
      %1275 = vmatprep.subr.bf16.mxu0 0
      %1276 = vmatpush2.bf16.xpose.msra.mxu0 0
      %1277 = vmatprep.subr.bf16.mxu0 0
      %1278 = vmatpush2.bf16.xpose.msra.mxu0 0
      %1279 = vmatprep.subr.bf16.mxu0 0
      %1280 = vmatpush2.bf16.xpose.msra.mxu0 0
      %1281 = vmatprep.subr.bf16.mxu0 0
      %1282 = vmatpush2.bf16.xpose.msra.mxu0 0
      %1283 = vmatprep.subr.bf16.mxu0 0
      %1284 = vmatpush2.bf16.xpose.msra.mxu0 0
      %1285 = vmatprep.subr.bf16.mxu0 0
      %1286 = vmatpush2.bf16.xpose.msra.mxu0 0
      %1287 = vmatprep.mubr.bf16.mxu0 0
      %1288 = vmatmul.mubr.bf16.gmra.mxu0 %v1232
      %v1289 = vpop.f32.mrf.mxu0
      %v1290 = vadd.f32 %v1187, %v1289
      %v1291 = vpop.f32.mrf.mxu0
      %v1292 = vpop.f32.mrf.mxu0
      %v1293 = vadd.f32 %v1188, %v1292
      %v1294 = vpop.f32.mrf.mxu0
      %1295 = vmatprep.mubr.bf16.mxu0 0
      %1296 = vmatmul.mubr.bf16.gmra.mxu0 %v1235
      %v1297 = vpop.f32.mrf.mxu0
      %v1298 = vadd.f32 %v1189, %v1297
      %v1299 = vpop.f32.mrf.mxu0
      %v1300 = vpop.f32.mrf.mxu0
      %v1301 = vadd.f32 %v1190, %v1300
      %v1302 = vpop.f32.mrf.mxu0
      %1303 = vmatprep.mubr.bf16.mxu0 0
      %1304 = vmatmul.mubr.bf16.gmra.mxu0 %v1238
      %v1305 = vpop.f32.mrf.mxu0
      %v1306 = vadd.f32 %v1191, %v1305
      %v1307 = vpop.f32.mrf.mxu0
      %v1308 = vpop.f32.mrf.mxu0
      %v1309 = vadd.f32 %v1192, %v1308
      %v1310 = vpop.f32.mrf.mxu0
      %1311 = vmatprep.mubr.bf16.mxu0 0
      %1312 = vmatmul.mubr.bf16.gmra.mxu0 %v1241
      %v1313 = vpop.f32.mrf.mxu0
      %v1314 = vadd.f32 %v1193, %v1313
      %v1315 = vpop.f32.mrf.mxu0
      %v1316 = vpop.f32.mrf.mxu0
      %v1317 = vadd.f32 %v1194, %v1316
      %v1318 = vpop.f32.mrf.mxu0
      %1319 = vdwg.mxu0
      %v1328 = vunpack.c.l.b16 %v1178
      %v1329 = vunpack.c.l.b16 %v1179
      %v1330 = vunpack.c.l.b16 %v1180
      %v1331 = vunpack.c.l.b16 %v1181
      %v1332 = vunpack.c.l.b16 %v1182
      %v1333 = vunpack.c.l.b16 %v1183
      %v1334 = vunpack.c.l.b16 %v1184
      %v1335 = vunpack.c.l.b16 %v1185
      %v1336 = vpack.c.b16 %v1329, %v1328
      %v1337 = vpack.c.b16 %v1331, %v1330
      %v1338 = vpack.c.b16 %v1333, %v1332
      %v1339 = vpack.c.b16 %v1335, %v1334
      %1340 = vrot.lane.b32.xlu0 %v1336, 112
      %v1341 = vpop.permute.xlu0 %1340
      %1342 = vrot.lane.b32.xlu0 %v1337, 112
      %v1343 = vpop.permute.xlu0 %1342
      %1344 = vrot.lane.b32.xlu0 %v1338, 112
      %v1345 = vpop.permute.xlu0 %1344
      %1346 = vrot.lane.b32.xlu0 %v1339, 112
      %v1347 = vpop.permute.xlu0 %1346
      %1348 = vrot.lane.b32.xlu0 %v1336, 80
      %v1349 = vpop.permute.xlu0 %1348
      %1350 = vrot.lane.b32.xlu0 %v1337, 80
      %v1351 = vpop.permute.xlu0 %1350
      %1352 = vrot.lane.b32.xlu0 %v1338, 80
      %v1353 = vpop.permute.xlu0 %1352
      %1354 = vrot.lane.b32.xlu0 %v1339, 80
      %v1355 = vpop.permute.xlu0 %1354
      %v1357 = vsel %vm590, %v1341, 0
      %v1360 = vsel %vm590, %v1343, 0
      %v1363 = vsel %vm590, %v1345, 0
      %v1366 = vsel %vm590, %v1347, 0
      %v1369 = vsel %vm590, %v1349, 0
      %v1372 = vsel %vm590, %v1351, 0
      %v1375 = vsel %vm590, %v1353, 0
      %v1378 = vsel %vm590, %v1355, 0
      %1380 = vmatprep.subr.bf16.mxu0 0
      %1381 = vmatpush1.bf16.xpose.msra.mxu0 0
      %1382 = vmatprep.subr.bf16.mxu0 0
      %1383 = vmatpush1.bf16.xpose.msra.mxu0 0
      %1384 = vmatprep.subr.bf16.mxu0 0
      %1385 = vmatpush1.bf16.xpose.msra.mxu0 0
      %1386 = vmatprep.subr.bf16.mxu0 0
      %1387 = vmatpush1.bf16.xpose.msra.mxu0 0
      %1388 = vmatprep.subr.bf16.mxu0 0
      %1389 = vmatpush1.bf16.xpose.msra.mxu0 %v1378
      %1390 = vmatprep.subr.bf16.mxu0 0
      %1391 = vmatpush1.bf16.xpose.msra.mxu0 %v1375
      %1392 = vmatprep.subr.bf16.mxu0 0
      %1393 = vmatpush1.bf16.xpose.msra.mxu0 %v1372
      %1394 = vmatprep.subr.bf16.mxu0 0
      %1395 = vmatpush1.bf16.xpose.msra.mxu0 %v1369
      %1396 = vmatprep.subr.bf16.mxu0 0
      %1397 = vmatpush2.bf16.xpose.msra.mxu0 0
      %1398 = vmatprep.subr.bf16.mxu0 0
      %1399 = vmatpush2.bf16.xpose.msra.mxu0 0
      %1400 = vmatprep.subr.bf16.mxu0 0
      %1401 = vmatpush2.bf16.xpose.msra.mxu0 0
      %1402 = vmatprep.subr.bf16.mxu0 0
      %1403 = vmatpush2.bf16.xpose.msra.mxu0 0
      %1404 = vmatprep.subr.bf16.mxu0 0
      %1405 = vmatpush2.bf16.xpose.msra.mxu0 0
      %1406 = vmatprep.subr.bf16.mxu0 0
      %1407 = vmatpush2.bf16.xpose.msra.mxu0 0
      %1408 = vmatprep.subr.bf16.mxu0 0
      %1409 = vmatpush2.bf16.xpose.msra.mxu0 0
      %1410 = vmatprep.subr.bf16.mxu0 0
      %1411 = vmatpush2.bf16.xpose.msra.mxu0 0
      %1412 = vmatprep.mubr.bf16.mxu0 0
      %1413 = vmatmul.mubr.bf16.gmra.mxu0 %v1357
      %v1414 = vpop.f32.mrf.mxu0
      %v1415 = vadd.f32 %v1187, %v1414
      %v1416 = vpop.f32.mrf.mxu0
      %v1417 = vpop.f32.mrf.mxu0
      %v1418 = vadd.f32 %v1188, %v1417
      %v1419 = vpop.f32.mrf.mxu0
      %1420 = vmatprep.mubr.bf16.mxu0 0
      %1421 = vmatmul.mubr.bf16.gmra.mxu0 %v1360
      %v1422 = vpop.f32.mrf.mxu0
      %v1423 = vadd.f32 %v1189, %v1422
      %v1424 = vpop.f32.mrf.mxu0
      %v1425 = vpop.f32.mrf.mxu0
      %v1426 = vadd.f32 %v1190, %v1425
      %v1427 = vpop.f32.mrf.mxu0
      %1428 = vmatprep.mubr.bf16.mxu0 0
      %1429 = vmatmul.mubr.bf16.gmra.mxu0 %v1363
      %v1430 = vpop.f32.mrf.mxu0
      %v1431 = vadd.f32 %v1191, %v1430
      %v1432 = vpop.f32.mrf.mxu0
      %v1433 = vpop.f32.mrf.mxu0
      %v1434 = vadd.f32 %v1192, %v1433
      %v1435 = vpop.f32.mrf.mxu0
      %1436 = vmatprep.mubr.bf16.mxu0 0
      %1437 = vmatmul.mubr.bf16.gmra.mxu0 %v1366
      %v1438 = vpop.f32.mrf.mxu0
      %v1439 = vadd.f32 %v1193, %v1438
      %v1440 = vpop.f32.mrf.mxu0
      %v1441 = vpop.f32.mrf.mxu0
      %v1442 = vadd.f32 %v1194, %v1441
      %v1443 = vpop.f32.mrf.mxu0
      %1444 = vdwg.mxu0
      %v1445 = vsel %vm797, %v1290, -inf
      %1446 = vmax.xlane.f32.xlu0 %v1445
      %v1447 = vpop.xlane.xlu0 %1446
      %v1448 = vsel %vm797, %v1293, -inf
      %1449 = vmax.xlane.f32.xlu0 %v1448
      %v1450 = vpop.xlane.xlu0 %1449
      %v1451 = vsel %vm797, %v1298, -inf
      %1452 = vmax.xlane.f32.xlu0 %v1451
      %v1453 = vpop.xlane.xlu0 %1452
      %v1454 = vsel %vm797, %v1301, -inf
      %1455 = vmax.xlane.f32.xlu0 %v1454
      %v1456 = vpop.xlane.xlu0 %1455
      %v1457 = vsel %vm797, %v1306, -inf
      %1458 = vmax.xlane.f32.xlu0 %v1457
      %v1459 = vpop.xlane.xlu0 %1458
      %v1460 = vsel %vm797, %v1309, -inf
      %1461 = vmax.xlane.f32.xlu0 %v1460
      %v1462 = vpop.xlane.xlu0 %1461
      %v1463 = vsel %vm797, %v1314, -inf
      %1464 = vmax.xlane.f32.xlu0 %v1463
      %v1465 = vpop.xlane.xlu0 %1464
      %v1466 = vsel %vm797, %v1317, -inf
      %1467 = vmax.xlane.f32.xlu0 %v1466
      %v1468 = vpop.xlane.xlu0 %1467
      %v1469 = vsel %vm797, %v1415, -inf
      %1470 = vmax.xlane.f32.xlu0 %v1469
      %v1471 = vpop.xlane.xlu0 %1470
      %v1472 = vsel %vm797, %v1418, -inf
      %1473 = vmax.xlane.f32.xlu0 %v1472
      %v1474 = vpop.xlane.xlu0 %1473
      %v1475 = vsel %vm797, %v1423, -inf
      %1476 = vmax.xlane.f32.xlu0 %v1475
      %v1477 = vpop.xlane.xlu0 %1476
      %v1478 = vsel %vm797, %v1426, -inf
      %1479 = vmax.xlane.f32.xlu0 %v1478
      %v1480 = vpop.xlane.xlu0 %1479
      %v1481 = vsel %vm797, %v1431, -inf
      %1482 = vmax.xlane.f32.xlu0 %v1481
      %v1483 = vpop.xlane.xlu0 %1482
      %v1484 = vsel %vm797, %v1434, -inf
      %1485 = vmax.xlane.f32.xlu0 %v1484
      %v1486 = vpop.xlane.xlu0 %1485
      %v1487 = vsel %vm797, %v1439, -inf
      %1488 = vmax.xlane.f32.xlu0 %v1487
      %v1489 = vpop.xlane.xlu0 %1488
      %v1490 = vsel %vm797, %v1442, -inf
      %1491 = vmax.xlane.f32.xlu0 %v1490
      %v1492 = vpop.xlane.xlu0 %1491
      %v1493 = vsub.f32 %v1290, %v1447
      %v1494 = vsub.f32 %v1293, %v1450
      %v1495 = vsub.f32 %v1298, %v1453
      %v1496 = vsub.f32 %v1301, %v1456
      %v1497 = vsub.f32 %v1306, %v1459
      %v1498 = vsub.f32 %v1309, %v1462
      %v1499 = vsub.f32 %v1314, %v1465
      %v1500 = vsub.f32 %v1317, %v1468
      %v1501 = vsub.f32 %v1415, %v1471
      %v1502 = vsub.f32 %v1418, %v1474
      %v1503 = vsub.f32 %v1423, %v1477
      %v1504 = vsub.f32 %v1426, %v1480
      %v1505 = vsub.f32 %v1431, %v1483
      %v1506 = vsub.f32 %v1434, %v1486
      %v1507 = vsub.f32 %v1439, %v1489
      %v1508 = vsub.f32 %v1442, %v1492
      %v1509 = vmul.f32 %v1493, 1.442695
      %v1510 = vpow.pop %v1509
      %v1511 = vmul.f32 %v1494, 1.442695
      %v1512 = vpow.pop %v1511
      %v1513 = vmul.f32 %v1495, 1.442695
      %v1514 = vpow.pop %v1513
      %v1515 = vmul.f32 %v1496, 1.442695
      %v1516 = vpow.pop %v1515
      %v1517 = vmul.f32 %v1497, 1.442695
      %v1518 = vpow.pop %v1517
      %v1519 = vmul.f32 %v1498, 1.442695
      %v1520 = vpow.pop %v1519
      %v1521 = vmul.f32 %v1499, 1.442695
      %v1522 = vpow.pop %v1521
      %v1523 = vmul.f32 %v1500, 1.442695
      %v1524 = vpow.pop %v1523
      %v1525 = vmul.f32 %v1501, 1.442695
      %v1526 = vpow.pop %v1525
      %v1527 = vmul.f32 %v1502, 1.442695
      %v1528 = vpow.pop %v1527
      %v1529 = vmul.f32 %v1503, 1.442695
      %v1530 = vpow.pop %v1529
      %v1531 = vmul.f32 %v1504, 1.442695
      %v1532 = vpow.pop %v1531
      %v1533 = vmul.f32 %v1505, 1.442695
      %v1534 = vpow.pop %v1533
      %v1535 = vmul.f32 %v1506, 1.442695
      %v1536 = vpow.pop %v1535
      %v1537 = vmul.f32 %v1507, 1.442695
      %v1538 = vpow.pop %v1537
      %v1539 = vmul.f32 %v1508, 1.442695
      %v1540 = vpow.pop %v1539
      %v1541 = vsel %vm797, %v1510, 0.0
      %1542 = vadd.xlane.f32.xlu0 %v1541
      %v1543 = vpop.xlane.xlu0 %1542
      %v1544 = vsel %vm797, %v1512, 0.0
      %1545 = vadd.xlane.f32.xlu0 %v1544
      %v1546 = vpop.xlane.xlu0 %1545
      %v1547 = vsel %vm797, %v1514, 0.0
      %1548 = vadd.xlane.f32.xlu0 %v1547
      %v1549 = vpop.xlane.xlu0 %1548
      %v1550 = vsel %vm797, %v1516, 0.0
      %1551 = vadd.xlane.f32.xlu0 %v1550
      %v1552 = vpop.xlane.xlu0 %1551
      %v1553 = vsel %vm797, %v1518, 0.0
      %1554 = vadd.xlane.f32.xlu0 %v1553
      %v1555 = vpop.xlane.xlu0 %1554
      %v1556 = vsel %vm797, %v1520, 0.0
      %1557 = vadd.xlane.f32.xlu0 %v1556
      %v1558 = vpop.xlane.xlu0 %1557
      %v1559 = vsel %vm797, %v1522, 0.0
      %1560 = vadd.xlane.f32.xlu0 %v1559
      %v1561 = vpop.xlane.xlu0 %1560
      %v1562 = vsel %vm797, %v1524, 0.0
      %1563 = vadd.xlane.f32.xlu0 %v1562
      %v1564 = vpop.xlane.xlu0 %1563
      %v1565 = vsel %vm797, %v1526, 0.0
      %1566 = vadd.xlane.f32.xlu0 %v1565
      %v1567 = vpop.xlane.xlu0 %1566
      %v1568 = vsel %vm797, %v1528, 0.0
      %1569 = vadd.xlane.f32.xlu0 %v1568
      %v1570 = vpop.xlane.xlu0 %1569
      %v1571 = vsel %vm797, %v1530, 0.0
      %1572 = vadd.xlane.f32.xlu0 %v1571
      %v1573 = vpop.xlane.xlu0 %1572
      %v1574 = vsel %vm797, %v1532, 0.0
      %1575 = vadd.xlane.f32.xlu0 %v1574
      %v1576 = vpop.xlane.xlu0 %1575
      %v1577 = vsel %vm797, %v1534, 0.0
      %1578 = vadd.xlane.f32.xlu0 %v1577
      %v1579 = vpop.xlane.xlu0 %1578
      %v1580 = vsel %vm797, %v1536, 0.0
      %1581 = vadd.xlane.f32.xlu0 %v1580
      %v1582 = vpop.xlane.xlu0 %1581
      %v1583 = vsel %vm797, %v1538, 0.0
      %1584 = vadd.xlane.f32.xlu0 %v1583
      %v1585 = vpop.xlane.xlu0 %1584
      %v1586 = vsel %vm797, %v1540, 0.0
      %1587 = vadd.xlane.f32.xlu0 %v1586
      %v1588 = vpop.xlane.xlu0 %1587
      %v1589 = vpack.c.bf16 %v1512, %v1510
      %v1590 = vpack.c.bf16 %v1516, %v1514
      %v1591 = vpack.c.bf16 %v1520, %v1518
      %v1592 = vpack.c.bf16 %v1524, %v1522
      %v1593 = vpack.c.bf16 %v1528, %v1526
      %v1594 = vpack.c.bf16 %v1532, %v1530
      %v1595 = vpack.c.bf16 %v1536, %v1534
      %v1596 = vpack.c.bf16 %v1540, %v1538
      %1597 = vrot.lane.b32.xlu0 %v1211, 48
      %v1598 = vpop.permute.xlu0 %1597
      %1599 = vrot.lane.b32.xlu0 %v1212, 48
      %v1600 = vpop.permute.xlu0 %1599
      %1601 = vrot.lane.b32.xlu0 %v1213, 48
      %v1602 = vpop.permute.xlu0 %1601
      %1603 = vrot.lane.b32.xlu0 %v1214, 48
      %v1604 = vpop.permute.xlu0 %1603
      %v1610 = vsel %vm797, %v1589, 0
      %v1613 = vsel %vm797, %v1590, 0
      %v1616 = vsel %vm797, %v1591, 0
      %v1619 = vsel %vm797, %v1592, 0
      %1621 = vmatprep.subr.bf16.mxu0 0
      %1622 = vmatpush1.bf16.msra.mxu0 0
      %1623 = vmatprep.subr.bf16.mxu0 0
      %1624 = vmatpush1.bf16.msra.mxu0 0
      %1625 = vmatprep.subr.bf16.mxu0 0
      %1626 = vmatpush1.bf16.msra.mxu0 0
      %1627 = vmatprep.subr.bf16.mxu0 0
      %1628 = vmatpush1.bf16.msra.mxu0 0
      %1629 = vmatprep.subr.bf16.mxu0 0
      %1630 = vmatpush1.bf16.msra.mxu0 %v1604
      %1631 = vmatprep.subr.bf16.mxu0 0
      %1632 = vmatpush1.bf16.msra.mxu0 %v1602
      %1633 = vmatprep.subr.bf16.mxu0 0
      %1634 = vmatpush1.bf16.msra.mxu0 %v1600
      %1635 = vmatprep.subr.bf16.mxu0 0
      %1636 = vmatpush1.bf16.msra.mxu0 %v1598
      %1637 = vmatprep.subr.bf16.mxu0 0
      %1638 = vmatpush2.bf16.msra.mxu0 0
      %1639 = vmatprep.subr.bf16.mxu0 0
      %1640 = vmatpush2.bf16.msra.mxu0 0
      %1641 = vmatprep.subr.bf16.mxu0 0
      %1642 = vmatpush2.bf16.msra.mxu0 0
      %1643 = vmatprep.subr.bf16.mxu0 0
      %1644 = vmatpush2.bf16.msra.mxu0 0
      %1645 = vmatprep.subr.bf16.mxu0 0
      %1646 = vmatpush2.bf16.msra.mxu0 0
      %1647 = vmatprep.subr.bf16.mxu0 0
      %1648 = vmatpush2.bf16.msra.mxu0 0
      %1649 = vmatprep.subr.bf16.mxu0 0
      %1650 = vmatpush2.bf16.msra.mxu0 0
      %1651 = vmatprep.subr.bf16.mxu0 0
      %1652 = vmatpush2.bf16.msra.mxu0 0
      %1653 = vmatprep.mubr.bf16.mxu0 0
      %1654 = vmatmul.mubr.bf16.gmra.mxu0 %v1610
      %v1655 = vpop.f32.mrf.mxu0
      %v1656 = vadd.f32 0.0, %v1655
      %v1657 = vpop.f32.mrf.mxu0
      %v1658 = vpop.f32.mrf.mxu0
      %v1659 = vadd.f32 0.0, %v1658
      %v1660 = vpop.f32.mrf.mxu0
      %1661 = vmatprep.mubr.bf16.mxu0 0
      %1662 = vmatmul.mubr.bf16.gmra.mxu0 %v1613
      %v1663 = vpop.f32.mrf.mxu0
      %v1664 = vadd.f32 0.0, %v1663
      %v1665 = vpop.f32.mrf.mxu0
      %v1666 = vpop.f32.mrf.mxu0
      %v1667 = vadd.f32 0.0, %v1666
      %v1668 = vpop.f32.mrf.mxu0
      %1669 = vmatprep.mubr.bf16.mxu0 0
      %1670 = vmatmul.mubr.bf16.gmra.mxu0 %v1616
      %v1671 = vpop.f32.mrf.mxu0
      %v1672 = vadd.f32 0.0, %v1671
      %v1673 = vpop.f32.mrf.mxu0
      %v1674 = vpop.f32.mrf.mxu0
      %v1675 = vadd.f32 0.0, %v1674
      %v1676 = vpop.f32.mrf.mxu0
      %1677 = vmatprep.mubr.bf16.mxu0 0
      %1678 = vmatmul.mubr.bf16.gmra.mxu0 %v1619
      %v1679 = vpop.f32.mrf.mxu0
      %v1680 = vadd.f32 0.0, %v1679
      %v1681 = vpop.f32.mrf.mxu0
      %v1682 = vpop.f32.mrf.mxu0
      %v1683 = vadd.f32 0.0, %v1682
      %v1684 = vpop.f32.mrf.mxu0
      %1685 = vdwg.mxu0
      %1686 = vrot.lane.b32.xlu0 %v1336, 48
      %v1687 = vpop.permute.xlu0 %1686
      %1688 = vrot.lane.b32.xlu0 %v1337, 48
      %v1689 = vpop.permute.xlu0 %1688
      %1690 = vrot.lane.b32.xlu0 %v1338, 48
      %v1691 = vpop.permute.xlu0 %1690
      %1692 = vrot.lane.b32.xlu0 %v1339, 48
      %v1693 = vpop.permute.xlu0 %1692
      %v1699 = vsel %vm797, %v1593, 0
      %v1702 = vsel %vm797, %v1594, 0
      %v1705 = vsel %vm797, %v1595, 0
      %v1708 = vsel %vm797, %v1596, 0
      %1710 = vmatprep.subr.bf16.mxu0 0
      %1711 = vmatpush1.bf16.msra.mxu0 0
      %1712 = vmatprep.subr.bf16.mxu0 0
      %1713 = vmatpush1.bf16.msra.mxu0 0
      %1714 = vmatprep.subr.bf16.mxu0 0
      %1715 = vmatpush1.bf16.msra.mxu0 0
      %1716 = vmatprep.subr.bf16.mxu0 0
      %1717 = vmatpush1.bf16.msra.mxu0 0
      %1718 = vmatprep.subr.bf16.mxu0 0
      %1719 = vmatpush1.bf16.msra.mxu0 %v1693
      %1720 = vmatprep.subr.bf16.mxu0 0
      %1721 = vmatpush1.bf16.msra.mxu0 %v1691
      %1722 = vmatprep.subr.bf16.mxu0 0
      %1723 = vmatpush1.bf16.msra.mxu0 %v1689
      %1724 = vmatprep.subr.bf16.mxu0 0
      %1725 = vmatpush1.bf16.msra.mxu0 %v1687
      %1726 = vmatprep.subr.bf16.mxu0 0
      %1727 = vmatpush2.bf16.msra.mxu0 0
      %1728 = vmatprep.subr.bf16.mxu0 0
      %1729 = vmatpush2.bf16.msra.mxu0 0
      %1730 = vmatprep.subr.bf16.mxu0 0
      %1731 = vmatpush2.bf16.msra.mxu0 0
      %1732 = vmatprep.subr.bf16.mxu0 0
      %1733 = vmatpush2.bf16.msra.mxu0 0
      %1734 = vmatprep.subr.bf16.mxu0 0
      %1735 = vmatpush2.bf16.msra.mxu0 0
      %1736 = vmatprep.subr.bf16.mxu0 0
      %1737 = vmatpush2.bf16.msra.mxu0 0
      %1738 = vmatprep.subr.bf16.mxu0 0
      %1739 = vmatpush2.bf16.msra.mxu0 0
      %1740 = vmatprep.subr.bf16.mxu0 0
      %1741 = vmatpush2.bf16.msra.mxu0 0
      %1742 = vmatprep.mubr.bf16.mxu0 0
      %1743 = vmatmul.mubr.bf16.gmra.mxu0 %v1699
      %v1744 = vpop.f32.mrf.mxu0
      %v1745 = vadd.f32 0.0, %v1744
      %v1746 = vpop.f32.mrf.mxu0
      %v1747 = vpop.f32.mrf.mxu0
      %v1748 = vadd.f32 0.0, %v1747
      %v1749 = vpop.f32.mrf.mxu0
      %1750 = vmatprep.mubr.bf16.mxu0 0
      %1751 = vmatmul.mubr.bf16.gmra.mxu0 %v1702
      %v1752 = vpop.f32.mrf.mxu0
      %v1753 = vadd.f32 0.0, %v1752
      %v1754 = vpop.f32.mrf.mxu0
      %v1755 = vpop.f32.mrf.mxu0
      %v1756 = vadd.f32 0.0, %v1755
      %v1757 = vpop.f32.mrf.mxu0
      %1758 = vmatprep.mubr.bf16.mxu0 0
      %1759 = vmatmul.mubr.bf16.gmra.mxu0 %v1705
      %v1760 = vpop.f32.mrf.mxu0
      %v1761 = vadd.f32 0.0, %v1760
      %v1762 = vpop.f32.mrf.mxu0
      %v1763 = vpop.f32.mrf.mxu0
      %v1764 = vadd.f32 0.0, %v1763
      %v1765 = vpop.f32.mrf.mxu0
      %1766 = vmatprep.mubr.bf16.mxu0 0
      %1767 = vmatmul.mubr.bf16.gmra.mxu0 %v1708
      %v1768 = vpop.f32.mrf.mxu0
      %v1769 = vadd.f32 0.0, %v1768
      %v1770 = vpop.f32.mrf.mxu0
      %v1771 = vpop.f32.mrf.mxu0
      %v1772 = vadd.f32 0.0, %v1771
      %v1773 = vpop.f32.mrf.mxu0
      %1774 = vdwg.mxu0
      %v1775 = vrcp.pop %v1543
      %v1776 = vrcp.pop %v1546
      %v1777 = vrcp.pop %v1549
      %v1778 = vrcp.pop %v1552
      %v1779 = vrcp.pop %v1555
      %v1780 = vrcp.pop %v1558
      %v1781 = vrcp.pop %v1561
      %v1782 = vrcp.pop %v1564
      %v1783 = vrcp.pop %v1567
      %v1784 = vrcp.pop %v1570
      %v1785 = vrcp.pop %v1573
      %v1786 = vrcp.pop %v1576
      %v1787 = vrcp.pop %v1579
      %v1788 = vrcp.pop %v1582
      %v1789 = vrcp.pop %v1585
      %v1790 = vrcp.pop %v1588
      %v1791 = vmul.f32 %v1656, %v1775
      %v1792 = vmul.f32 %v1659, %v1776
      %v1793 = vmul.f32 %v1664, %v1777
      %v1794 = vmul.f32 %v1667, %v1778
      %v1795 = vmul.f32 %v1672, %v1779
      %v1796 = vmul.f32 %v1675, %v1780
      %v1797 = vmul.f32 %v1680, %v1781
      %v1798 = vmul.f32 %v1683, %v1782
      %v1799 = vmul.f32 %v1745, %v1783
      %v1800 = vmul.f32 %v1748, %v1784
      %v1801 = vmul.f32 %v1753, %v1785
      %v1802 = vmul.f32 %v1756, %v1786
      %v1803 = vmul.f32 %v1761, %v1787
      %v1804 = vmul.f32 %v1764, %v1788
      %v1805 = vmul.f32 %v1769, %v1789
      %v1806 = vmul.f32 %v1772, %v1790
      %v1807 = vpack.c.bf16 %v1792, %v1791
      %v1808 = vpack.c.bf16 %v1794, %v1793
      %v1809 = vpack.c.bf16 %v1796, %v1795
      %v1810 = vpack.c.bf16 %v1798, %v1797
      %v1811 = vpack.c.bf16 %v1800, %v1799
      %v1812 = vpack.c.bf16 %v1802, %v1801
      %v1813 = vpack.c.bf16 %v1804, %v1803
      %v1814 = vpack.c.bf16 %v1806, %v1805
      %v1815 = vld [vmem:[%s3 + $0x8] sm:$0xf]
      %v1816 = vld [vmem:[%s3 + $0xc] sm:$0xf]
      %v1819 = vunpack.c.l.b16 %v1815
      %v1820 = vunpack.c.l.b16 %v1816
      %v1821 = vpack.c.b16 %v1820, %v1819
      %v1824 = vsel %vm590, %v1807, 0
      %v1827 = vsel %vm590, %v1808, 0
      %v1830 = vsel %vm590, %v1809, 0
      %v1833 = vsel %vm590, %v1810, 0
      %v1836 = vsel %vm590, %v1811, 0
      %v1839 = vsel %vm590, %v1812, 0
      %v1842 = vsel %vm590, %v1813, 0
      %v1845 = vsel %vm590, %v1814, 0
      %1847 = vmatprep.subr.bf16.mxu0 0
      %1848 = vmatpush1.bf16.msra.mxu0 0
      %1849 = vmatprep.subr.bf16.mxu0 0
      %1850 = vmatpush1.bf16.msra.mxu0 0
      %1851 = vmatprep.subr.bf16.mxu0 0
      %1852 = vmatpush1.bf16.msra.mxu0 0
      %1853 = vmatprep.subr.bf16.mxu0 0
      %1854 = vmatpush1.bf16.msra.mxu0 0
      %1855 = vmatprep.subr.bf16.mxu0 0
      %1856 = vmatpush1.bf16.msra.mxu0 0
      %1857 = vmatprep.subr.bf16.mxu0 0
      %1858 = vmatpush1.bf16.msra.mxu0 0
      %1859 = vmatprep.subr.bf16.mxu0 0
      %1860 = vmatpush1.bf16.msra.mxu0 0
      %1861 = vmatprep.subr.bf16.mxu0 0
      %1862 = vmatpush1.bf16.msra.mxu0 %v1821
      %1863 = vmatprep.subr.bf16.mxu0 0
      %1864 = vmatpush2.bf16.msra.mxu0 0
      %1865 = vmatprep.subr.bf16.mxu0 0
      %1866 = vmatpush2.bf16.msra.mxu0 0
      %1867 = vmatprep.subr.bf16.mxu0 0
      %1868 = vmatpush2.bf16.msra.mxu0 0
      %1869 = vmatprep.subr.bf16.mxu0 0
      %1870 = vmatpush2.bf16.msra.mxu0 0
      %1871 = vmatprep.subr.bf16.mxu0 0
      %1872 = vmatpush2.bf16.msra.mxu0 0
      %1873 = vmatprep.subr.bf16.mxu0 0
      %1874 = vmatpush2.bf16.msra.mxu0 0
      %1875 = vmatprep.subr.bf16.mxu0 0
      %1876 = vmatpush2.bf16.msra.mxu0 0
      %1877 = vmatprep.subr.bf16.mxu0 0
      %1878 = vmatpush2.bf16.msra.mxu0 0
      %1879 = vmatprep.mubr.bf16.mxu0 0
      %1880 = vmatmul.mubr.bf16.gmra.mxu0 %v1824
      %v1881 = vpop.f32.mrf.mxu0
      %v1882 = vadd.f32 0.0, %v1881
      %v1883 = vpop.f32.mrf.mxu0
      %v1884 = vpop.f32.mrf.mxu0
      %v1885 = vadd.f32 0.0, %v1884
      %v1886 = vpop.f32.mrf.mxu0
      %1887 = vmatprep.mubr.bf16.mxu0 0
      %1888 = vmatmul.mubr.bf16.gmra.mxu0 %v1827
      %v1889 = vpop.f32.mrf.mxu0
      %v1890 = vadd.f32 0.0, %v1889
      %v1891 = vpop.f32.mrf.mxu0
      %v1892 = vpop.f32.mrf.mxu0
      %v1893 = vadd.f32 0.0, %v1892
      %v1894 = vpop.f32.mrf.mxu0
      %1895 = vmatprep.mubr.bf16.mxu0 0
      %1896 = vmatmul.mubr.bf16.gmra.mxu0 %v1830
      %v1897 = vpop.f32.mrf.mxu0
      %v1898 = vadd.f32 0.0, %v1897
      %v1899 = vpop.f32.mrf.mxu0
      %v1900 = vpop.f32.mrf.mxu0
      %v1901 = vadd.f32 0.0, %v1900
      %v1902 = vpop.f32.mrf.mxu0
      %1903 = vmatprep.mubr.bf16.mxu0 0
      %1904 = vmatmul.mubr.bf16.gmra.mxu0 %v1833
      %v1905 = vpop.f32.mrf.mxu0
      %v1906 = vadd.f32 0.0, %v1905
      %v1907 = vpop.f32.mrf.mxu0
      %v1908 = vpop.f32.mrf.mxu0
      %v1909 = vadd.f32 0.0, %v1908
      %v1910 = vpop.f32.mrf.mxu0
      %1911 = vmatprep.mubr.bf16.mxu0 0
      %1912 = vmatmul.mubr.bf16.gmra.mxu0 %v1836
      %v1913 = vpop.f32.mrf.mxu0
      %v1914 = vadd.f32 0.0, %v1913
      %v1915 = vpop.f32.mrf.mxu0
      %v1916 = vpop.f32.mrf.mxu0
      %v1917 = vadd.f32 0.0, %v1916
      %v1918 = vpop.f32.mrf.mxu0
      %1919 = vmatprep.mubr.bf16.mxu0 0
      %1920 = vmatmul.mubr.bf16.gmra.mxu0 %v1839
      %v1921 = vpop.f32.mrf.mxu0
      %v1922 = vadd.f32 0.0, %v1921
      %v1923 = vpop.f32.mrf.mxu0
      %v1924 = vpop.f32.mrf.mxu0
      %v1925 = vadd.f32 0.0, %v1924
      %v1926 = vpop.f32.mrf.mxu0
      %1927 = vmatprep.mubr.bf16.mxu0 0
      %1928 = vmatmul.mubr.bf16.gmra.mxu0 %v1842
      %v1929 = vpop.f32.mrf.mxu0
      %v1930 = vadd.f32 0.0, %v1929
      %v1931 = vpop.f32.mrf.mxu0
      %v1932 = vpop.f32.mrf.mxu0
      %v1933 = vadd.f32 0.0, %v1932
      %v1934 = vpop.f32.mrf.mxu0
      %1935 = vmatprep.mubr.bf16.mxu0 0
      %1936 = vmatmul.mubr.bf16.gmra.mxu0 %v1845
      %v1937 = vpop.f32.mrf.mxu0
      %v1938 = vadd.f32 0.0, %v1937
      %v1939 = vpop.f32.mrf.mxu0
      %v1940 = vpop.f32.mrf.mxu0
      %v1941 = vadd.f32 0.0, %v1940
      %v1942 = vpop.f32.mrf.mxu0
      %1943 = vdwg.mxu0
      %v1946 = vunpack.c.l.b16 %v1168
      %v1947 = vunpack.c.l.b16 %v1169
      %v1948 = vpack.c.b16 %v1947, %v1946
      %v1951 = vsel %vm590, %v1160, 0
      %v1954 = vsel %vm590, %v1161, 0
      %v1957 = vsel %vm590, %v1162, 0
      %v1960 = vsel %vm590, %v1163, 0
      %v1963 = vsel %vm590, %v1164, 0
      %v1966 = vsel %vm590, %v1165, 0
      %v1969 = vsel %vm590, %v1166, 0
      %v1972 = vsel %vm590, %v1167, 0
      %1974 = vmatprep.subr.bf16.mxu0 0
      %1975 = vmatpush1.bf16.msra.mxu0 0
      %1976 = vmatprep.subr.bf16.mxu0 0
      %1977 = vmatpush1.bf16.msra.mxu0 0
      %1978 = vmatprep.subr.bf16.mxu0 0
      %1979 = vmatpush1.bf16.msra.mxu0 0
      %1980 = vmatprep.subr.bf16.mxu0 0
      %1981 = vmatpush1.bf16.msra.mxu0 0
      %1982 = vmatprep.subr.bf16.mxu0 0
      %1983 = vmatpush1.bf16.msra.mxu0 0
      %1984 = vmatprep.subr.bf16.mxu0 0
      %1985 = vmatpush1.bf16.msra.mxu0 0
      %1986 = vmatprep.subr.bf16.mxu0 0
      %1987 = vmatpush1.bf16.msra.mxu0 0
      %1988 = vmatprep.subr.bf16.mxu0 0
      %1989 = vmatpush1.bf16.msra.mxu0 %v1948
      %1990 = vmatprep.subr.bf16.mxu0 0
      %1991 = vmatpush2.bf16.msra.mxu0 0
      %1992 = vmatprep.subr.bf16.mxu0 0
      %1993 = vmatpush2.bf16.msra.mxu0 0
      %1994 = vmatprep.subr.bf16.mxu0 0
      %1995 = vmatpush2.bf16.msra.mxu0 0
      %1996 = vmatprep.subr.bf16.mxu0 0
      %1997 = vmatpush2.bf16.msra.mxu0 0
      %1998 = vmatprep.subr.bf16.mxu0 0
      %1999 = vmatpush2.bf16.msra.mxu0 0
      %2000 = vmatprep.subr.bf16.mxu0 0
      %2001 = vmatpush2.bf16.msra.mxu0 0
      %2002 = vmatprep.subr.bf16.mxu0 0
      %2003 = vmatpush2.bf16.msra.mxu0 0
      %2004 = vmatprep.subr.bf16.mxu0 0
      %2005 = vmatpush2.bf16.msra.mxu0 0
      %2006 = vmatprep.mubr.bf16.mxu0 0
      %2007 = vmatmul.mubr.bf16.gmra.mxu0 %v1951
      %v2008 = vpop.f32.mrf.mxu0
      %v2009 = vadd.f32 %v1882, %v2008
      %v2010 = vpop.f32.mrf.mxu0
      %v2011 = vpop.f32.mrf.mxu0
      %v2012 = vadd.f32 %v1885, %v2011
      %v2013 = vpop.f32.mrf.mxu0
      %2014 = vmatprep.mubr.bf16.mxu0 0
      %2015 = vmatmul.mubr.bf16.gmra.mxu0 %v1954
      %v2016 = vpop.f32.mrf.mxu0
      %v2017 = vadd.f32 %v1890, %v2016
      %v2018 = vpop.f32.mrf.mxu0
      %v2019 = vpop.f32.mrf.mxu0
      %v2020 = vadd.f32 %v1893, %v2019
      %v2021 = vpop.f32.mrf.mxu0
      %2022 = vmatprep.mubr.bf16.mxu0 0
      %2023 = vmatmul.mubr.bf16.gmra.mxu0 %v1957
      %v2024 = vpop.f32.mrf.mxu0
      %v2025 = vadd.f32 %v1898, %v2024
      %v2026 = vpop.f32.mrf.mxu0
      %v2027 = vpop.f32.mrf.mxu0
      %v2028 = vadd.f32 %v1901, %v2027
      %v2029 = vpop.f32.mrf.mxu0
      %2030 = vmatprep.mubr.bf16.mxu0 0
      %2031 = vmatmul.mubr.bf16.gmra.mxu0 %v1960
      %v2032 = vpop.f32.mrf.mxu0
      %v2033 = vadd.f32 %v1906, %v2032
      %v2034 = vpop.f32.mrf.mxu0
      %v2035 = vpop.f32.mrf.mxu0
      %v2036 = vadd.f32 %v1909, %v2035
      %v2037 = vpop.f32.mrf.mxu0
      %2038 = vmatprep.mubr.bf16.mxu0 0
      %2039 = vmatmul.mubr.bf16.gmra.mxu0 %v1963
      %v2040 = vpop.f32.mrf.mxu0
      %v2041 = vadd.f32 %v1914, %v2040
      %v2042 = vpop.f32.mrf.mxu0
      %v2043 = vpop.f32.mrf.mxu0
      %v2044 = vadd.f32 %v1917, %v2043
      %v2045 = vpop.f32.mrf.mxu0
      %2046 = vmatprep.mubr.bf16.mxu0 0
      %2047 = vmatmul.mubr.bf16.gmra.mxu0 %v1966
      %v2048 = vpop.f32.mrf.mxu0
      %v2049 = vadd.f32 %v1922, %v2048
      %v2050 = vpop.f32.mrf.mxu0
      %v2051 = vpop.f32.mrf.mxu0
      %v2052 = vadd.f32 %v1925, %v2051
      %v2053 = vpop.f32.mrf.mxu0
      %2054 = vmatprep.mubr.bf16.mxu0 0
      %2055 = vmatmul.mubr.bf16.gmra.mxu0 %v1969
      %v2056 = vpop.f32.mrf.mxu0
      %v2057 = vadd.f32 %v1930, %v2056
      %v2058 = vpop.f32.mrf.mxu0
      %v2059 = vpop.f32.mrf.mxu0
      %v2060 = vadd.f32 %v1933, %v2059
      %v2061 = vpop.f32.mrf.mxu0
      %2062 = vmatprep.mubr.bf16.mxu0 0
      %2063 = vmatmul.mubr.bf16.gmra.mxu0 %v1972
      %v2064 = vpop.f32.mrf.mxu0
      %v2065 = vadd.f32 %v1938, %v2064
      %v2066 = vpop.f32.mrf.mxu0
      %v2067 = vpop.f32.mrf.mxu0
      %v2068 = vadd.f32 %v1941, %v2067
      %v2069 = vpop.f32.mrf.mxu0
      %2070 = vdwg.mxu0
      %v2071 = vld [vmem:[%s4] sm:$0x1]
      %v2073 = vlaneseq
      %v2074 = vshrl.u32 %v2073, 7
      %v2075 = vsub.s32 0, %v2074
      %v2076 = vrot.slane %v2071, %v2075
      %v2078 = vadd.f32 %v2009, %v2076
      %v2079 = vadd.f32 %v2012, %v2076
      %v2080 = vadd.f32 %v2017, %v2076
      %v2081 = vadd.f32 %v2020, %v2076
      %v2082 = vadd.f32 %v2025, %v2076
      %v2083 = vadd.f32 %v2028, %v2076
      %v2084 = vadd.f32 %v2033, %v2076
      %v2085 = vadd.f32 %v2036, %v2076
      %v2086 = vadd.f32 %v2041, %v2076
      %v2087 = vadd.f32 %v2044, %v2076
      %v2088 = vadd.f32 %v2049, %v2076
      %v2089 = vadd.f32 %v2052, %v2076
      %v2090 = vadd.f32 %v2057, %v2076
      %v2091 = vadd.f32 %v2060, %v2076
      %v2092 = vadd.f32 %v2065, %v2076
      %v2093 = vadd.f32 %v2068, %v2076
      %v2094 = vpack.c.bf16 %v2079, %v2078
      %v2095 = vpack.c.bf16 %v2081, %v2080
      %v2096 = vpack.c.bf16 %v2083, %v2082
      %v2097 = vpack.c.bf16 %v2085, %v2084
      %v2098 = vpack.c.bf16 %v2087, %v2086
      %v2099 = vpack.c.bf16 %v2089, %v2088
      %v2100 = vpack.c.bf16 %v2091, %v2090
      %v2101 = vpack.c.bf16 %v2093, %v2092
      %v2110 = vunpack.c.l.b16 %v2094
      %v2111 = vunpack.c.h.b16 %v2094
      %v2112 = vunpack.c.l.b16 %v2095
      %v2113 = vunpack.c.h.b16 %v2095
      %v2114 = vunpack.c.l.b16 %v2096
      %v2115 = vunpack.c.h.b16 %v2096
      %v2116 = vunpack.c.l.b16 %v2097
      %v2117 = vunpack.c.h.b16 %v2097
      %v2118 = vunpack.c.l.b16 %v2098
      %v2119 = vunpack.c.h.b16 %v2098
      %v2120 = vunpack.c.l.b16 %v2099
      %v2121 = vunpack.c.h.b16 %v2099
      %v2122 = vunpack.c.l.b16 %v2100
      %v2123 = vunpack.c.h.b16 %v2100
      %v2124 = vunpack.c.l.b16 %v2101
      %v2125 = vunpack.c.h.b16 %v2101
      %v2126 = vpack.c.b16 %v2110, %v2110
      %v2127 = vpack.c.b16 %v2111, %v2111
      %v2128 = vpack.c.b16 %v2112, %v2112
      %v2129 = vpack.c.b16 %v2113, %v2113
      %v2130 = vpack.c.b16 %v2114, %v2114
      %v2131 = vpack.c.b16 %v2115, %v2115
      %v2132 = vpack.c.b16 %v2116, %v2116
      %v2133 = vpack.c.b16 %v2117, %v2117
      %v2134 = vpack.c.b16 %v2118, %v2118
      %v2135 = vpack.c.b16 %v2119, %v2119
      %v2136 = vpack.c.b16 %v2120, %v2120
      %v2137 = vpack.c.b16 %v2121, %v2121
      %v2138 = vpack.c.b16 %v2122, %v2122
      %v2139 = vpack.c.b16 %v2123, %v2123
      %v2140 = vpack.c.b16 %v2124, %v2124
      %v2141 = vpack.c.b16 %v2125, %v2125
      %vm2158 = vcmask 257024
      %2159 = vst.msk [vmem:[%s253] sm:$0xf] %vm2158, %v2126
      %2160 = vst.msk [vmem:[%s253 + $0x4] sm:$0xf] %vm2158, %v2127
      %2161 = vst.msk [vmem:[%s253 + $0x8] sm:$0xf] %vm2158, %v2128
      %2162 = vst.msk [vmem:[%s253 + $0xc] sm:$0xf] %vm2158, %v2129
      %2163 = vst.msk [vmem:[%s253 + $0x10] sm:$0xf] %vm2158, %v2130
      %2164 = vst.msk [vmem:[%s253 + $0x14] sm:$0xf] %vm2158, %v2131
      %2165 = vst.msk [vmem:[%s253 + $0x18] sm:$0xf] %vm2158, %v2132
      %2166 = vst.msk [vmem:[%s253 + $0x1c] sm:$0xf] %vm2158, %v2133
      %2167 = vst.msk [vmem:[%s253 + $0x20] sm:$0xf] %vm2158, %v2134
      %2168 = vst.msk [vmem:[%s253 + $0x24] sm:$0xf] %vm2158, %v2135
      %2169 = vst.msk [vmem:[%s253 + $0x28] sm:$0xf] %vm2158, %v2136
      %2170 = vst.msk [vmem:[%s253 + $0x2c] sm:$0xf] %vm2158, %v2137
      %2171 = vst.msk [vmem:[%s253 + $0x30] sm:$0xf] %vm2158, %v2138
      %2172 = vst.msk [vmem:[%s253 + $0x34] sm:$0xf] %vm2158, %v2139
      %2173 = vst.msk [vmem:[%s253 + $0x38] sm:$0xf] %vm2158, %v2140
      %2174 = vst.msk [vmem:[%s253 + $0x3c] sm:$0xf] %vm2158, %v2141
      %s2175 = smul.u32 16, %s17
      %p2176 = scmp.lt.s32.totalorder %s2175, 63
      %s2177 = scalar_select %p2176, %s2175, 63
      %s2178 = smul.addr %s2177, 4
      %s2179 = scalar_lea.vmem %s6, %s2178
      // Predicated region
      $region45: #{tpu_custom_call.1} parent=43 // pred_check
        %p2180 = pneg %p166
      $region46: #{tpu_custom_call.1} parent=43 // pred_check_branch
        %2182 = sbr.rel (%p2180) target = $region48
      $region47: #{tpu_custom_call.1} parent=43 // pred_region
        %s2183 = smul.u32 16, %s17
      $region48: #{tpu_custom_call.1} parent=43 // pred_fallthru
        _
    $region44: #{tpu_custom_call.1} parent=5 // pred_fallthru
      _
    %p2184 = scmp.le.s32.totalorder 2, %s12
    // Predicated region
    $region49: #{tpu_custom_call.1} parent=5 // pred_check
      %p2185 = pneg %p2184
    $region50: #{tpu_custom_call.1} parent=5 // pred_check_branch
      %2187 = sbr.rel (%p2185) target = $region52
    $region51: #{tpu_custom_call.1} parent=5 // pred_region
      %s2188 = ssub.s32 %s12, 2
      // Predicated region
      $region53: #{tpu_custom_call.1} parent=51 // pred_check
        %p2189 = pneg %p172
      $region54: #{tpu_custom_call.1} parent=51 // pred_check_branch
        %2191 = sbr.rel (%p2189) target = $region56
      $region55: #{tpu_custom_call.1} parent=51 // pred_region
        %s2192 = smul.u32 16, %s18
        %p2193 = scmp.lt.s32.totalorder %s2192, 63
        %s2194 = scalar_select %p2193, %s2192, 63
        %s2195 = smul.addr %s2194, 4
        %s2196 = scalar_lea.vmem %s6, %s2195
      $region56: #{tpu_custom_call.1} parent=51 // pred_fallthru
        _
    $region52: #{tpu_custom_call.1} parent=5 // pred_fallthru
      _
  $region6: #{tpu_custom_call.1} parent=0 // loop_footer
    %s16 = sadd.s32 1, %s12
  $region7: #{tpu_custom_call.1} parent=0 // loop_footer_branch
    %11 = sbr.rel target = $region3
  $region8: #{tpu_custom_call.1} parent=0 // loop_exit
    _

</llo_original>
